<compile_context>
chip_gen: v5e
topology: v5e:2x2
jax: 0.10.0
libtpu: 0.0.40
codegen_flags: <defaults>
</compile_context>

<pallas_src>
import math
import functools

import jax
import jax.numpy as jnp
from jax.experimental import pallas as pl
from jax.experimental.pallas import tpu as pltpu

# ---------------- model configuration (small, consistent with the module) ----
B = 2            # batch
L = 6            # RNA length
S = L + 2        # L + cls + eos
D = 32           # embedding dim (stands in for 768)
NUM_HEADS = 4
HEAD_DIM = D // NUM_HEADS
FFN = 64
NUM_LAYERS = 2
VOCAB = 16
LN_EPS = 1e-5
_SCALE = 1.0 / math.sqrt(HEAD_DIM)

# row layout of the packed per-layer (6, D) small-vector tensor
_BO, _LN1G, _LN1B, _B2, _LN2G, _LN2B = range(6)


# ---------------- small math helpers (lower cleanly in Mosaic) ---------------
def _gelu(x):
    # tanh-approximate GELU: one EUP tanh instead of a VALU erf polynomial.
    # TODO(synk): PyTorch's default GELU is exact erf; difference is ~1e-3 in
    # activation value — swap in an erf lowering if bit-level parity with the
    # pretrained checkpoint is required.
    c = 0.7978845608028654  # sqrt(2/pi)
    return 0.5 * x * (1.0 + jnp.tanh(c * (x + 0.044715 * x * x * x)))


def _layer_norm(x, g, b):
    mu = jnp.mean(x, axis=-1, keepdims=True)
    var = jnp.mean(jnp.square(x - mu), axis=-1, keepdims=True)
    return (x - mu) * jax.lax.rsqrt(var + LN_EPS) * g + b


# ---------------- Pallas kernel: full encoder stack --------------------------
def _make_encoder_kernel(nh, attn_layer):
    """attn_layer: None -> no score output; int -> emit pre-softmax logits of
    batch 0 at that layer into a (nh, S, S) output block."""
    emit = attn_layer is not None

    def kernel(x_ref, bias_ref, wqkv_ref, bqkv_ref, wo_ref,
               w1_ref, b1_ref, w2_ref, vecd_ref, *out_refs):
        if emit:
            out_ref, scores_ref = out_refs
        else:
            (out_ref,) = out_refs

        layer = pl.program_id(0)

        # Layer 0: seed the resident (B, S, D) activation block.
        @pl.when(layer == 0)
        def _():
            out_ref[...] = x_ref[...]

        bsz, seq, dim = out_ref.shape
        hd = dim // nh

        h3 = out_ref[...]                       # (B, S, D) f32, resident
        h = h3.reshape(bsz * seq, dim)          # (B*S, D) lane-dense
        bias2d = bias_ref[...]                  # (S, S) additive 2D bias

        vecd = vecd_ref[0]                      # (6, D): bo, ln1g, ln1b, b2, ln2g, ln2b

        # --- fused QKV: single lane-dense matmul, bf16 MXU, f32 accumulate ---
        qkv = jnp.dot(h.astype(jnp.bfloat16), wqkv_ref[0],
                      preferred_element_type=jnp.float32) + bqkv_ref[0]   # (B*S, 3D)

        # --- multi-head attention (scale already folded into wq) ---
        ctx_heads = []
        s0_heads = []
        for hh in range(nh):
            qs = qkv[:, hh * hd:(hh + 1) * hd].reshape(bsz, seq, hd)
            ks = qkv[:, dim + hh * hd:dim + (hh + 1) * hd].reshape(bsz, seq, hd)
            vs = qkv[:, 2 * dim + hh * hd:2 * dim + (hh + 1) * hd].reshape(bsz, seq, hd)
            s = jnp.einsum("bqd,bkd->bqk", qs, ks,
                           preferred_element_type=jnp.float32) + bias2d[None]
            if emit:
                s0_heads.append(s[0])           # batch-0 pre-softmax logits
            p = jax.nn.softmax(s, axis=-1)      # f32
            ctx_heads.append(jnp.einsum("bqk,bkd->bqd", p, vs,
                                        preferred_element_type=jnp.float32))
            # TODO(synk): no key-padding mask applied (toy batch has no pads).

        if emit:
            # Only the requested layer writes the score block (single small
            # (nh, S, S) HBM writeback instead of (L*B, nh, S, S)).
            # TODO(synk): verify pre- vs post-softmax storage against the
            # pretrained fairseq encoder's attn_map_lst convention.
            @pl.when(layer == attn_layer)
            def _():
                scores_ref[...] = jnp.stack(s0_heads, axis=0)

        # lane-dense context + single (D, D) output projection
        ctx = jnp.concatenate(ctx_heads, axis=-1).reshape(bsz * seq, dim)
        attn = jnp.dot(ctx.astype(jnp.bfloat16), wo_ref[0],
                       preferred_element_type=jnp.float32) + vecd[_BO:_BO + 1]

        # --- residual + layernorm 1 ---
        h1 = _layer_norm(h + attn, vecd[_LN1G:_LN1G + 1], vecd[_LN1B:_LN1B + 1])

        # --- FFN ---
        f = jnp.dot(h1.astype(jnp.bfloat16), w1_ref[0],
                    preferred_element_type=jnp.float32) + b1_ref[0]
        f = _gelu(f)
        f = jnp.dot(f.astype(jnp.bfloat16), w2_ref[0],
                    preferred_element_type=jnp.float32) + vecd[_B2:_B2 + 1]

        # --- residual + layernorm 2; write back resident activation ---
        h2 = _layer_norm(h1 + f, vecd[_LN2G:_LN2G + 1], vecd[_LN2B:_LN2B + 1])
        out_ref[...] = h2.reshape(bsz, seq, dim)

    return kernel


def encoder_stack(h, bias2d, p, *, attn_layer=None):
    """All NUM_LAYERS encoder layers fused in a single pallas_call.

    grid = (layer,): batch is folded into the resident (B, S, D) activation
    block, so each layer's weight set is DMA'd exactly once; the layer axis is
    "arbitrary" (accumulator pattern over the resident activations).
    """
    bsz, seq, dim = h.shape
    nl, _, three_d = p["wqkv"].shape
    ffn = p["w1"].shape[-1]
    nh = NUM_HEADS
    emit = attn_layer is not None

    in_specs = [
        pl.BlockSpec((bsz, seq, dim), lambda l: (0, 0, 0)),       # embedded x (fetched once)
        pl.BlockSpec((seq, seq), lambda l: (0, 0)),               # 2D bias
        pl.BlockSpec((1, dim, three_d), lambda l: (l, 0, 0)),     # wqkv (bf16)
        pl.BlockSpec((1, 1, three_d), lambda l: (l, 0, 0)),       # bqkv
        pl.BlockSpec((1, dim, dim), lambda l: (l, 0, 0)),         # wo (bf16)
        pl.BlockSpec((1, dim, ffn), lambda l: (l, 0, 0)),         # w1 (bf16)
        pl.BlockSpec((1, 1, ffn), lambda l: (l, 0, 0)),           # b1
        pl.BlockSpec((1, ffn, dim), lambda l: (l, 0, 0)),         # w2 (bf16)
        pl.BlockSpec((1, 6, dim), lambda l: (l, 0, 0)),           # packed biases/LN
    ]
    out_specs = [pl.BlockSpec((bsz, seq, dim), lambda l: (0, 0, 0))]   # resident acts
    out_shape = [jax.ShapeDtypeStruct((bsz, seq, dim), jnp.float32)]
    if emit:
        out_specs.append(pl.BlockSpec((nh, seq, seq), lambda l: (0, 0, 0)))
        out_shape.append(jax.ShapeDtypeStruct((nh, seq, seq), jnp.float32))

    outs = pl.pallas_call(
        _make_encoder_kernel(nh, attn_layer),
        grid=(nl,),
        in_specs=in_specs,
        out_specs=tuple(out_specs) if emit else out_specs[0],
        out_shape=tuple(out_shape) if emit else out_shape[0],
        compiler_params=pltpu.CompilerParams(
            dimension_semantics=("arbitrary",),
            vmem_limit_bytes=32 * 1024 * 1024),
    )(h, bias2d, p["wqkv"], p["bqkv"], p["wo"], p["w1"], p["b1"], p["w2"],
      p["vecd"])

    return outs


# ---------------- ErnieRNAOnestage forward -----------------------------------
@functools.partial(jax.jit, static_argnames=("return_attn_map", "i", "j"))
def ernie_rna_onestage(x_tokens, twod_input, params,
                       return_attn_map=False, i=NUM_LAYERS - 1, j=1):
    """x_tokens: [B, L+2] int32; twod_input: [1, L+2, L+2, 1] float32."""
    # ---- embedding + embedding layernorm (XLA glue: gather) ----
    h = jnp.take(params["emb"], x_tokens, axis=0) + params["pos"][None, :, :]
    h = _layer_norm(h, params["emb_ln_g"], params["emb_ln_b"]).astype(jnp.float32)

    bias2d = twod_input[0, :, :, 0].astype(jnp.float32)   # (S, S) additive bias

    if return_attn_map:
        _, scores = encoder_stack(h, bias2d, params, attn_layer=i)
        # F.softmax(attn_map_lst[i][0, j], dim=-1) — tiny glue op on (S, S)
        return jax.nn.softmax(scores[j], axis=-1)

    # inner_states[-1].transpose(0, 1)  ==  [B, S, D] in this layout
    return encoder_stack(h, bias2d, params, attn_layer=None)


# ---------------- deterministic synthetic parameters -------------------------
def init_params(key):
    def nrm(k, shape, scale=0.02):
        return (scale * jax.random.normal(k, shape)).astype(jnp.float32)

    keys = jax.random.split(key, 2 + NUM_LAYERS)
    wqkv, bqkv, wo, w1, b1, w2, vecd = [], [], [], [], [], [], []
    for l in range(NUM_LAYERS):
        lk = jax.random.split(keys[2 + l], 6)
        # attention-score scale folded into wq at param-prep time
        wq = nrm(lk[0], (D, D)) * _SCALE
        wk = nrm(lk[1], (D, D))
        wv = nrm(lk[2], (D, D))
        wqkv.append(jnp.concatenate([wq, wk, wv], axis=1))           # (D, 3D)
        bqkv.append(jnp.zeros((1, 3 * D), jnp.float32))              # (1, 3D)
        wo.append(nrm(lk[3], (D, D)))                                # (D, D)
        w1.append(nrm(lk[4], (D, FFN)))
        b1.append(jnp.zeros((1, FFN), jnp.float32))
        w2.append(nrm(lk[5], (FFN, D)))
        # packed (6, D): bo, ln1_g, ln1_b, b2, ln2_g, ln2_b
        vecd.append(jnp.stack([
            jnp.zeros(D), jnp.ones(D), jnp.zeros(D),
            jnp.zeros(D), jnp.ones(D), jnp.zeros(D)]).astype(jnp.float32))

    return {
        "emb": nrm(keys[0], (VOCAB, D)),
        "pos": nrm(keys[1], (S, D)),
        "emb_ln_g": jnp.ones((1, D), jnp.float32),
        "emb_ln_b": jnp.zeros((1, D), jnp.float32),
        "wqkv": jnp.stack(wqkv).astype(jnp.bfloat16),   # (L, D, 3D)  bf16 weights
        "bqkv": jnp.stack(bqkv),                        # (L, 1, 3D)  f32
        "wo": jnp.stack(wo).astype(jnp.bfloat16),       # (L, D, D)
        "w1": jnp.stack(w1).astype(jnp.bfloat16),       # (L, D, FFN)
        "b1": jnp.stack(b1),                            # (L, 1, FFN) f32
        "w2": jnp.stack(w2).astype(jnp.bfloat16),       # (L, FFN, D)
        "vecd": jnp.stack(vecd),                        # (L, 6, D)   f32
    }


if __name__ == "__main__":
    key = jax.random.PRNGKey(0)
    k_tok, k_2d, k_par = jax.random.split(key, 3)

    x_tokens = jax.random.randint(k_tok, (B, S), 0, VOCAB, dtype=jnp.int32)
    twod_input = jax.random.normal(k_2d, (1, S, S, 1), dtype=jnp.float32)
    params = init_params(k_par)

    # main path: last-layer hidden states, shape [B, L+2, D]
    out = ernie_rna_onestage(x_tokens, twod_input, params)
    out = jax.block_until_ready(out)
    assert out.shape == (B, S, D), out.shape
    assert bool(jnp.all(jnp.isfinite(out)))

    # return_attn_map path: softmax(attn_map_lst[i][0, j]), shape [S, S]
    # (module defaults i=12, j=5 assume the full 12-layer model; use in-range
    #  indices for this small synthetic config)
    attn = ernie_rna_onestage(x_tokens, twod_input, params,
                              return_attn_map=True, i=NUM_LAYERS - 1, j=1)
    attn = jax.block_until_ready(attn)
    assert attn.shape == (S, S), attn.shape
    assert bool(jnp.all(jnp.isfinite(attn)))
    # rows of a softmax sum to 1
    assert bool(jnp.allclose(jnp.sum(attn, axis=-1), 1.0, atol=1e-5))

    print("KERNEL_OK")
</pallas_src>

<mosaic_0001>
module attributes {stable_mosaic.version = 11 : i64} {
  func.func @kernel(%arg0: i32, %arg1: memref<2x8x32xf32, #tpu.memory_space<vmem>>, %arg2: memref<8x8xf32, #tpu.memory_space<vmem>>, %arg3: memref<1x32x96xbf16, #tpu.memory_space<vmem>>, %arg4: memref<1x1x96xf32, #tpu.memory_space<vmem>>, %arg5: memref<1x32x32xbf16, #tpu.memory_space<vmem>>, %arg6: memref<1x32x64xbf16, #tpu.memory_space<vmem>>, %arg7: memref<1x1x64xf32, #tpu.memory_space<vmem>>, %arg8: memref<1x64x32xbf16, #tpu.memory_space<vmem>>, %arg9: memref<1x6x32xf32, #tpu.memory_space<vmem>>, %arg10: memref<2x8x32xf32, #tpu.memory_space<vmem>>) attributes {dimension_semantics = [#tpu.dimension_semantics<arbitrary>], iteration_bounds = array<i64: 2>, scalar_prefetch = 0 : i64, scratch_operands = 0 : i64, tpu.core_type = #tpu.core_type<tc>, window_params = [{pipeline_mode = #tpu.pipeline_mode<synchronous>, transform_indices = @transform_0, window_bounds = array<i64: 2, 8, 32>}, {pipeline_mode = #tpu.pipeline_mode<synchronous>, transform_indices = @transform_1, window_bounds = array<i64: 8, 8>}, {transform_indices = @transform_2, window_bounds = array<i64: 1, 32, 96>}, {transform_indices = @transform_3, window_bounds = array<i64: 1, 1, 96>}, {transform_indices = @transform_4, window_bounds = array<i64: 1, 32, 32>}, {transform_indices = @transform_5, window_bounds = array<i64: 1, 32, 64>}, {transform_indices = @transform_6, window_bounds = array<i64: 1, 1, 64>}, {transform_indices = @transform_7, window_bounds = array<i64: 1, 64, 32>}, {transform_indices = @transform_8, window_bounds = array<i64: 1, 6, 32>}, {pipeline_mode = #tpu.pipeline_mode<synchronous>, transform_indices = @transform_9, window_bounds = array<i64: 2, 8, 32>}]} {
    %c0_i32 = arith.constant 0 : i32
    %0 = arith.cmpi eq, %arg0, %c0_i32 : i32
    %1 = arith.extui %0 : i1 to i32
    %c0_i32_0 = arith.constant 0 : i32
    %2 = arith.cmpi ne, %1, %c0_i32_0 : i32
    scf.if %2 {
      %c0_66 = arith.constant 0 : index
      %c0_67 = arith.constant 0 : index
      %c0_68 = arith.constant 0 : index
      %193 = vector.load %arg1[%c0_66, %c0_67, %c0_68] : memref<2x8x32xf32, #tpu.memory_space<vmem>>, vector<2x8x32xf32>
      %c0_69 = arith.constant 0 : index
      %c0_70 = arith.constant 0 : index
      %c0_71 = arith.constant 0 : index
      %194 = vector.load %arg10[%c0_69, %c0_70, %c0_71] : memref<2x8x32xf32, #tpu.memory_space<vmem>>, vector<2x8x32xf32>
      tpu.vector_store %arg10[%c0_69, %c0_70, %c0_71], %193 {strides = array<i32>} : memref<2x8x32xf32, #tpu.memory_space<vmem>>, vector<2x8x32xf32>,
    } else {
    }
    %c0 = arith.constant 0 : index
    %c0_1 = arith.constant 0 : index
    %c0_2 = arith.constant 0 : index
    %3 = vector.load %arg10[%c0, %c0_1, %c0_2] : memref<2x8x32xf32, #tpu.memory_space<vmem>>, vector<2x8x32xf32>
    %4 = vector.shape_cast %3 : vector<2x8x32xf32> to vector<16x32xf32>
    %c0_3 = arith.constant 0 : index
    %c0_4 = arith.constant 0 : index
    %5 = vector.load %arg2[%c0_3, %c0_4] : memref<8x8xf32, #tpu.memory_space<vmem>>, vector<8x8xf32>
    %c0_5 = arith.constant 0 : index
    %c0_6 = arith.constant 0 : index
    %c0_7 = arith.constant 0 : index
    %6 = vector.load %arg9[%c0_5, %c0_6, %c0_7] : memref<1x6x32xf32, #tpu.memory_space<vmem>>, vector<1x6x32xf32>
    %7 = vector.shape_cast %6 : vector<1x6x32xf32> to vector<6x32xf32>
    %8 = arith.truncf %4 : vector<16x32xf32> to vector<16x32xbf16>
    %c0_8 = arith.constant 0 : index
    %c0_9 = arith.constant 0 : index
    %c0_10 = arith.constant 0 : index
    %9 = vector.load %arg3[%c0_8, %c0_9, %c0_10] : memref<1x32x96xbf16, #tpu.memory_space<vmem>>, vector<1x32x96xbf16>
    %10 = vector.shape_cast %9 : vector<1x32x96xbf16> to vector<32x96xbf16>
    %cst = arith.constant dense<0.000000e+00> : vector<16x96xf32>
    %11 = tpu.matmul %8, %10, %cst {dimension_numbers = #tpu.dot_dimension_numbers<[1], [0], [0], [1], [0, 0, 1, 1], [], []>} : vector<16x32xbf16>, vector<32x96xbf16>, vector<16x96xf32> -> vector<16x96xf32>
    %c0_11 = arith.constant 0 : index
    %c0_12 = arith.constant 0 : index
    %c0_13 = arith.constant 0 : index
    %12 = vector.load %arg4[%c0_11, %c0_12, %c0_13] : memref<1x1x96xf32, #tpu.memory_space<vmem>>, vector<1x1x96xf32>
    %13 = vector.shape_cast %12 : vector<1x1x96xf32> to vector<1x96xf32>
    %14 = vector.broadcast %13 : vector<1x96xf32> to vector<16x96xf32>
    %15 = arith.addf %11, %14 : vector<16x96xf32>
    %16 = vector.extract_strided_slice %15 {offsets = [0, 0], sizes = [16, 8], strides = [1, 1]} : vector<16x96xf32> to vector<16x8xf32>
    %17 = vector.shape_cast %16 : vector<16x8xf32> to vector<2x8x8xf32>
    %18 = vector.extract_strided_slice %15 {offsets = [0, 32], sizes = [16, 8], strides = [1, 1]} : vector<16x96xf32> to vector<16x8xf32>
    %19 = vector.shape_cast %18 : vector<16x8xf32> to vector<2x8x8xf32>
    %20 = vector.extract_strided_slice %15 {offsets = [0, 64], sizes = [16, 8], strides = [1, 1]} : vector<16x96xf32> to vector<16x8xf32>
    %21 = vector.shape_cast %20 : vector<16x8xf32> to vector<2x8x8xf32>
    "tpu.trace_start"() <{level = 10 : i32, message = "bqd,bkd->bqk"}> : () -> ()
    %cst_14 = arith.constant dense<0.000000e+00> : vector<2x8x8xf32>
    %22 = tpu.matmul %17, %19, %cst_14 {dimension_numbers = #tpu.dot_dimension_numbers<[2], [2], [1], [1], [0, 0, 0, 1, 1, 1], [0], [0]>} : vector<2x8x8xf32>, vector<2x8x8xf32>, vector<2x8x8xf32> -> vector<2x8x8xf32>
    "tpu.trace_stop"() : () -> ()
    %23 = vector.shape_cast %5 : vector<8x8xf32> to vector<1x8x8xf32>
    %24 = vector.broadcast %23 : vector<1x8x8xf32> to vector<2x8x8xf32>
    %25 = arith.addf %22, %24 : vector<2x8x8xf32>
    %cst_15 = arith.constant dense<0xFF800000> : vector<2x8xf32>
    %26 = vector.multi_reduction <maximumf>, %25, %cst_15 [2] : vector<2x8x8xf32> to vector<2x8xf32>
    %cst_16 = arith.constant 0xFF800000 : f32
    %27 = vector.broadcast %cst_16 : f32 to vector<2x8xf32>
    %28 = arith.maximumf %27, %26 : vector<2x8xf32>
    %29 = vector.shape_cast %28 : vector<2x8xf32> to vector<2x8x1xf32>
    %30 = vector.broadcast %29 : vector<2x8x1xf32> to vector<2x8x8xf32>
    %31 = arith.subf %25, %30 : vector<2x8x8xf32>
    %32 = math.exp %31 : vector<2x8x8xf32>
    %cst_17 = arith.constant dense<0.000000e+00> : vector<2x8xf32>
    %33 = vector.multi_reduction <add>, %32, %cst_17 [2] : vector<2x8x8xf32> to vector<2x8xf32>
    %34 = vector.shape_cast %33 : vector<2x8xf32> to vector<2x8x1xf32>
    %35 = vector.broadcast %34 : vector<2x8x1xf32> to vector<2x8x8xf32>
    %36 = arith.divf %32, %35 : vector<2x8x8xf32>
    "tpu.trace_start"() <{level = 10 : i32, message = "bqk,bkd->bqd"}> : () -> ()
    %cst_18 = arith.constant dense<0.000000e+00> : vector<2x8x8xf32>
    %37 = tpu.matmul %36, %21, %cst_18 {dimension_numbers = #tpu.dot_dimension_numbers<[2], [1], [1], [2], [0, 0, 0, 1, 1, 2], [0], [0]>} : vector<2x8x8xf32>, vector<2x8x8xf32>, vector<2x8x8xf32> -> vector<2x8x8xf32>
    "tpu.trace_stop"() : () -> ()
    %38 = vector.extract_strided_slice %15 {offsets = [0, 8], sizes = [16, 8], strides = [1, 1]} : vector<16x96xf32> to vector<16x8xf32>
    %39 = vector.shape_cast %38 : vector<16x8xf32> to vector<2x8x8xf32>
    %40 = vector.extract_strided_slice %15 {offsets = [0, 40], sizes = [16, 8], strides = [1, 1]} : vector<16x96xf32> to vector<16x8xf32>
    %41 = vector.shape_cast %40 : vector<16x8xf32> to vector<2x8x8xf32>
    %42 = vector.extract_strided_slice %15 {offsets = [0, 72], sizes = [16, 8], strides = [1, 1]} : vector<16x96xf32> to vector<16x8xf32>
    %43 = vector.shape_cast %42 : vector<16x8xf32> to vector<2x8x8xf32>
    "tpu.trace_start"() <{level = 10 : i32, message = "bqd,bkd->bqk"}> : () -> ()
    %cst_19 = arith.constant dense<0.000000e+00> : vector<2x8x8xf32>
    %44 = tpu.matmul %39, %41, %cst_19 {dimension_numbers = #tpu.dot_dimension_numbers<[2], [2], [1], [1], [0, 0, 0, 1, 1, 1], [0], [0]>} : vector<2x8x8xf32>, vector<2x8x8xf32>, vector<2x8x8xf32> -> vector<2x8x8xf32>
    "tpu.trace_stop"() : () -> ()
    %45 = vector.shape_cast %5 : vector<8x8xf32> to vector<1x8x8xf32>
    %46 = vector.broadcast %45 : vector<1x8x8xf32> to vector<2x8x8xf32>
    %47 = arith.addf %44, %46 : vector<2x8x8xf32>
    %cst_20 = arith.constant dense<0xFF800000> : vector<2x8xf32>
    %48 = vector.multi_reduction <maximumf>, %47, %cst_20 [2] : vector<2x8x8xf32> to vector<2x8xf32>
    %cst_21 = arith.constant 0xFF800000 : f32
    %49 = vector.broadcast %cst_21 : f32 to vector<2x8xf32>
    %50 = arith.maximumf %49, %48 : vector<2x8xf32>
    %51 = vector.shape_cast %50 : vector<2x8xf32> to vector<2x8x1xf32>
    %52 = vector.broadcast %51 : vector<2x8x1xf32> to vector<2x8x8xf32>
    %53 = arith.subf %47, %52 : vector<2x8x8xf32>
    %54 = math.exp %53 : vector<2x8x8xf32>
    %cst_22 = arith.constant dense<0.000000e+00> : vector<2x8xf32>
    %55 = vector.multi_reduction <add>, %54, %cst_22 [2] : vector<2x8x8xf32> to vector<2x8xf32>
    %56 = vector.shape_cast %55 : vector<2x8xf32> to vector<2x8x1xf32>
    %57 = vector.broadcast %56 : vector<2x8x1xf32> to vector<2x8x8xf32>
    %58 = arith.divf %54, %57 : vector<2x8x8xf32>
    "tpu.trace_start"() <{level = 10 : i32, message = "bqk,bkd->bqd"}> : () -> ()
    %cst_23 = arith.constant dense<0.000000e+00> : vector<2x8x8xf32>
    %59 = tpu.matmul %58, %43, %cst_23 {dimension_numbers = #tpu.dot_dimension_numbers<[2], [1], [1], [2], [0, 0, 0, 1, 1, 2], [0], [0]>} : vector<2x8x8xf32>, vector<2x8x8xf32>, vector<2x8x8xf32> -> vector<2x8x8xf32>
    "tpu.trace_stop"() : () -> ()
    %60 = vector.extract_strided_slice %15 {offsets = [0, 16], sizes = [16, 8], strides = [1, 1]} : vector<16x96xf32> to vector<16x8xf32>
    %61 = vector.shape_cast %60 : vector<16x8xf32> to vector<2x8x8xf32>
    %62 = vector.extract_strided_slice %15 {offsets = [0, 48], sizes = [16, 8], strides = [1, 1]} : vector<16x96xf32> to vector<16x8xf32>
    %63 = vector.shape_cast %62 : vector<16x8xf32> to vector<2x8x8xf32>
    %64 = vector.extract_strided_slice %15 {offsets = [0, 80], sizes = [16, 8], strides = [1, 1]} : vector<16x96xf32> to vector<16x8xf32>
    %65 = vector.shape_cast %64 : vector<16x8xf32> to vector<2x8x8xf32>
    "tpu.trace_start"() <{level = 10 : i32, message = "bqd,bkd->bqk"}> : () -> ()
    %cst_24 = arith.constant dense<0.000000e+00> : vector<2x8x8xf32>
    %66 = tpu.matmul %61, %63, %cst_24 {dimension_numbers = #tpu.dot_dimension_numbers<[2], [2], [1], [1], [0, 0, 0, 1, 1, 1], [0], [0]>} : vector<2x8x8xf32>, vector<2x8x8xf32>, vector<2x8x8xf32> -> vector<2x8x8xf32>
    "tpu.trace_stop"() : () -> ()
    %67 = vector.shape_cast %5 : vector<8x8xf32> to vector<1x8x8xf32>
    %68 = vector.broadcast %67 : vector<1x8x8xf32> to vector<2x8x8xf32>
    %69 = arith.addf %66, %68 : vector<2x8x8xf32>
    %cst_25 = arith.constant dense<0xFF800000> : vector<2x8xf32>
    %70 = vector.multi_reduction <maximumf>, %69, %cst_25 [2] : vector<2x8x8xf32> to vector<2x8xf32>
    %cst_26 = arith.constant 0xFF800000 : f32
    %71 = vector.broadcast %cst_26 : f32 to vector<2x8xf32>
    %72 = arith.maximumf %71, %70 : vector<2x8xf32>
    %73 = vector.shape_cast %72 : vector<2x8xf32> to vector<2x8x1xf32>
    %74 = vector.broadcast %73 : vector<2x8x1xf32> to vector<2x8x8xf32>
    %75 = arith.subf %69, %74 : vector<2x8x8xf32>
    %76 = math.exp %75 : vector<2x8x8xf32>
    %cst_27 = arith.constant dense<0.000000e+00> : vector<2x8xf32>
    %77 = vector.multi_reduction <add>, %76, %cst_27 [2] : vector<2x8x8xf32> to vector<2x8xf32>
    %78 = vector.shape_cast %77 : vector<2x8xf32> to vector<2x8x1xf32>
    %79 = vector.broadcast %78 : vector<2x8x1xf32> to vector<2x8x8xf32>
    %80 = arith.divf %76, %79 : vector<2x8x8xf32>
    "tpu.trace_start"() <{level = 10 : i32, message = "bqk,bkd->bqd"}> : () -> ()
    %cst_28 = arith.constant dense<0.000000e+00> : vector<2x8x8xf32>
    %81 = tpu.matmul %80, %65, %cst_28 {dimension_numbers = #tpu.dot_dimension_numbers<[2], [1], [1], [2], [0, 0, 0, 1, 1, 2], [0], [0]>} : vector<2x8x8xf32>, vector<2x8x8xf32>, vector<2x8x8xf32> -> vector<2x8x8xf32>
    "tpu.trace_stop"() : () -> ()
    %82 = vector.extract_strided_slice %15 {offsets = [0, 24], sizes = [16, 8], strides = [1, 1]} : vector<16x96xf32> to vector<16x8xf32>
    %83 = vector.shape_cast %82 : vector<16x8xf32> to vector<2x8x8xf32>
    %84 = vector.extract_strided_slice %15 {offsets = [0, 56], sizes = [16, 8], strides = [1, 1]} : vector<16x96xf32> to vector<16x8xf32>
    %85 = vector.shape_cast %84 : vector<16x8xf32> to vector<2x8x8xf32>
    %86 = vector.extract_strided_slice %15 {offsets = [0, 88], sizes = [16, 8], strides = [1, 1]} : vector<16x96xf32> to vector<16x8xf32>
    %87 = vector.shape_cast %86 : vector<16x8xf32> to vector<2x8x8xf32>
    "tpu.trace_start"() <{level = 10 : i32, message = "bqd,bkd->bqk"}> : () -> ()
    %cst_29 = arith.constant dense<0.000000e+00> : vector<2x8x8xf32>
    %88 = tpu.matmul %83, %85, %cst_29 {dimension_numbers = #tpu.dot_dimension_numbers<[2], [2], [1], [1], [0, 0, 0, 1, 1, 1], [0], [0]>} : vector<2x8x8xf32>, vector<2x8x8xf32>, vector<2x8x8xf32> -> vector<2x8x8xf32>
    "tpu.trace_stop"() : () -> ()
    %89 = vector.shape_cast %5 : vector<8x8xf32> to vector<1x8x8xf32>
    %90 = vector.broadcast %89 : vector<1x8x8xf32> to vector<2x8x8xf32>
    %91 = arith.addf %88, %90 : vector<2x8x8xf32>
    %cst_30 = arith.constant dense<0xFF800000> : vector<2x8xf32>
    %92 = vector.multi_reduction <maximumf>, %91, %cst_30 [2] : vector<2x8x8xf32> to vector<2x8xf32>
    %cst_31 = arith.constant 0xFF800000 : f32
    %93 = vector.broadcast %cst_31 : f32 to vector<2x8xf32>
    %94 = arith.maximumf %93, %92 : vector<2x8xf32>
    %95 = vector.shape_cast %94 : vector<2x8xf32> to vector<2x8x1xf32>
    %96 = vector.broadcast %95 : vector<2x8x1xf32> to vector<2x8x8xf32>
    %97 = arith.subf %91, %96 : vector<2x8x8xf32>
    %98 = math.exp %97 : vector<2x8x8xf32>
    %cst_32 = arith.constant dense<0.000000e+00> : vector<2x8xf32>
    %99 = vector.multi_reduction <add>, %98, %cst_32 [2] : vector<2x8x8xf32> to vector<2x8xf32>
    %100 = vector.shape_cast %99 : vector<2x8xf32> to vector<2x8x1xf32>
    %101 = vector.broadcast %100 : vector<2x8x1xf32> to vector<2x8x8xf32>
    %102 = arith.divf %98, %101 : vector<2x8x8xf32>
    "tpu.trace_start"() <{level = 10 : i32, message = "bqk,bkd->bqd"}> : () -> ()
    %cst_33 = arith.constant dense<0.000000e+00> : vector<2x8x8xf32>
    %103 = tpu.matmul %102, %87, %cst_33 {dimension_numbers = #tpu.dot_dimension_numbers<[2], [1], [1], [2], [0, 0, 0, 1, 1, 2], [0], [0]>} : vector<2x8x8xf32>, vector<2x8x8xf32>, vector<2x8x8xf32> -> vector<2x8x8xf32>
    "tpu.trace_stop"() : () -> ()
    %104 = tpu.concatenate %37, %59, %81, %103 in 2 : vector<2x8x8xf32>, vector<2x8x8xf32>, vector<2x8x8xf32>, vector<2x8x8xf32> -> vector<2x8x32xf32>
    %105 = vector.shape_cast %104 : vector<2x8x32xf32> to vector<16x32xf32>
    %106 = arith.truncf %105 : vector<16x32xf32> to vector<16x32xbf16>
    %c0_34 = arith.constant 0 : index
    %c0_35 = arith.constant 0 : index
    %c0_36 = arith.constant 0 : index
    %107 = vector.load %arg5[%c0_34, %c0_35, %c0_36] : memref<1x32x32xbf16, #tpu.memory_space<vmem>>, vector<1x32x32xbf16>
    %108 = vector.shape_cast %107 : vector<1x32x32xbf16> to vector<32x32xbf16>
    %cst_37 = arith.constant dense<0.000000e+00> : vector<16x32xf32>
    %109 = tpu.matmul %106, %108, %cst_37 {dimension_numbers = #tpu.dot_dimension_numbers<[1], [0], [0], [1], [0, 0, 1, 1], [], []>} : vector<16x32xbf16>, vector<32x32xbf16>, vector<16x32xf32> -> vector<16x32xf32>
    %110 = vector.extract_strided_slice %7 {offsets = [0, 0], sizes = [1, 32], strides = [1, 1]} : vector<6x32xf32> to vector<1x32xf32>
    %111 = vector.broadcast %110 : vector<1x32xf32> to vector<16x32xf32>
    %112 = arith.addf %109, %111 : vector<16x32xf32>
    %113 = arith.addf %4, %112 : vector<16x32xf32>
    %114 = vector.extract_strided_slice %7 {offsets = [1, 0], sizes = [1, 32], strides = [1, 1]} : vector<6x32xf32> to vector<1x32xf32>
    %115 = vector.extract_strided_slice %7 {offsets = [2, 0], sizes = [1, 32], strides = [1, 1]} : vector<6x32xf32> to vector<1x32xf32>
    %cst_38 = arith.constant dense<0.000000e+00> : vector<16xf32>
    %116 = vector.multi_reduction <add>, %113, %cst_38 [1] : vector<16x32xf32> to vector<16xf32>
    %117 = vector.shape_cast %116 : vector<16xf32> to vector<16x1xf32>
    %cst_39 = arith.constant 3.200000e+01 : f32
    %118 = vector.broadcast %cst_39 : f32 to vector<16x1xf32>
    %119 = arith.divf %117, %118 : vector<16x1xf32>
    %120 = vector.broadcast %119 : vector<16x1xf32> to vector<16x32xf32>
    %121 = arith.subf %113, %120 : vector<16x32xf32>
    %122 = arith.mulf %121, %121 : vector<16x32xf32>
    %cst_40 = arith.constant dense<0.000000e+00> : vector<16xf32>
    %123 = vector.multi_reduction <add>, %122, %cst_40 [1] : vector<16x32xf32> to vector<16xf32>
    %124 = vector.shape_cast %123 : vector<16xf32> to vector<16x1xf32>
    %cst_41 = arith.constant 3.200000e+01 : f32
    %125 = vector.broadcast %cst_41 : f32 to vector<16x1xf32>
    %126 = arith.divf %124, %125 : vector<16x1xf32>
    %127 = vector.broadcast %119 : vector<16x1xf32> to vector<16x32xf32>
    %128 = arith.subf %113, %127 : vector<16x32xf32>
    %cst_42 = arith.constant 9.99999974E-6 : f32
    %129 = vector.broadcast %cst_42 : f32 to vector<16x1xf32>
    %130 = arith.addf %126, %129 : vector<16x1xf32>
    %131 = math.rsqrt %130 : vector<16x1xf32>
    %132 = vector.broadcast %131 : vector<16x1xf32> to vector<16x32xf32>
    %133 = arith.mulf %128, %132 : vector<16x32xf32>
    %134 = vector.broadcast %114 : vector<1x32xf32> to vector<16x32xf32>
    %135 = arith.mulf %133, %134 : vector<16x32xf32>
    %136 = vector.broadcast %115 : vector<1x32xf32> to vector<16x32xf32>
    %137 = arith.addf %135, %136 : vector<16x32xf32>
    %138 = arith.truncf %137 : vector<16x32xf32> to vector<16x32xbf16>
    %c0_43 = arith.constant 0 : index
    %c0_44 = arith.constant 0 : index
    %c0_45 = arith.constant 0 : index
    %139 = vector.load %arg6[%c0_43, %c0_44, %c0_45] : memref<1x32x64xbf16, #tpu.memory_space<vmem>>, vector<1x32x64xbf16>
    %140 = vector.shape_cast %139 : vector<1x32x64xbf16> to vector<32x64xbf16>
    %cst_46 = arith.constant dense<0.000000e+00> : vector<16x64xf32>
    %141 = tpu.matmul %138, %140, %cst_46 {dimension_numbers = #tpu.dot_dimension_numbers<[1], [0], [0], [1], [0, 0, 1, 1], [], []>} : vector<16x32xbf16>, vector<32x64xbf16>, vector<16x64xf32> -> vector<16x64xf32>
    %c0_47 = arith.constant 0 : index
    %c0_48 = arith.constant 0 : index
    %c0_49 = arith.constant 0 : index
    %142 = vector.load %arg7[%c0_47, %c0_48, %c0_49] : memref<1x1x64xf32, #tpu.memory_space<vmem>>, vector<1x1x64xf32>
    %143 = vector.shape_cast %142 : vector<1x1x64xf32> to vector<1x64xf32>
    %144 = vector.broadcast %143 : vector<1x64xf32> to vector<16x64xf32>
    %145 = arith.addf %141, %144 : vector<16x64xf32>
    %cst_50 = arith.constant 5.000000e-01 : f32
    %146 = vector.broadcast %cst_50 : f32 to vector<16x64xf32>
    %147 = arith.mulf %146, %145 : vector<16x64xf32>
    %cst_51 = arith.constant 4.471500e-02 : f32
    %148 = vector.broadcast %cst_51 : f32 to vector<16x64xf32>
    %149 = arith.mulf %148, %145 : vector<16x64xf32>
    %150 = arith.mulf %149, %145 : vector<16x64xf32>
    %151 = arith.mulf %150, %145 : vector<16x64xf32>
    %152 = arith.addf %145, %151 : vector<16x64xf32>
    %cst_52 = arith.constant 0.797884583 : f32
    %153 = vector.broadcast %cst_52 : f32 to vector<16x64xf32>
    %154 = arith.mulf %153, %152 : vector<16x64xf32>
    %155 = math.tanh %154 : vector<16x64xf32>
    %cst_53 = arith.constant 1.000000e+00 : f32
    %156 = vector.broadcast %cst_53 : f32 to vector<16x64xf32>
    %157 = arith.addf %156, %155 : vector<16x64xf32>
    %158 = arith.mulf %147, %157 : vector<16x64xf32>
    %159 = arith.truncf %158 : vector<16x64xf32> to vector<16x64xbf16>
    %c0_54 = arith.constant 0 : index
    %c0_55 = arith.constant 0 : index
    %c0_56 = arith.constant 0 : index
    %160 = vector.load %arg8[%c0_54, %c0_55, %c0_56] : memref<1x64x32xbf16, #tpu.memory_space<vmem>>, vector<1x64x32xbf16>
    %161 = vector.shape_cast %160 : vector<1x64x32xbf16> to vector<64x32xbf16>
    %cst_57 = arith.constant dense<0.000000e+00> : vector<16x32xf32>
    %162 = tpu.matmul %159, %161, %cst_57 {dimension_numbers = #tpu.dot_dimension_numbers<[1], [0], [0], [1], [0, 0, 1, 1], [], []>} : vector<16x64xbf16>, vector<64x32xbf16>, vector<16x32xf32> -> vector<16x32xf32>
    %163 = vector.extract_strided_slice %7 {offsets = [3, 0], sizes = [1, 32], strides = [1, 1]} : vector<6x32xf32> to vector<1x32xf32>
    %164 = vector.broadcast %163 : vector<1x32xf32> to vector<16x32xf32>
    %165 = arith.addf %162, %164 : vector<16x32xf32>
    %166 = arith.addf %137, %165 : vector<16x32xf32>
    %167 = vector.extract_strided_slice %7 {offsets = [4, 0], sizes = [1, 32], strides = [1, 1]} : vector<6x32xf32> to vector<1x32xf32>
    %168 = vector.extract_strided_slice %7 {offsets = [5, 0], sizes = [1, 32], strides = [1, 1]} : vector<6x32xf32> to vector<1x32xf32>
    %cst_58 = arith.constant dense<0.000000e+00> : vector<16xf32>
    %169 = vector.multi_reduction <add>, %166, %cst_58 [1] : vector<16x32xf32> to vector<16xf32>
    %170 = vector.shape_cast %169 : vector<16xf32> to vector<16x1xf32>
    %cst_59 = arith.constant 3.200000e+01 : f32
    %171 = vector.broadcast %cst_59 : f32 to vector<16x1xf32>
    %172 = arith.divf %170, %171 : vector<16x1xf32>
    %173 = vector.broadcast %172 : vector<16x1xf32> to vector<16x32xf32>
    %174 = arith.subf %166, %173 : vector<16x32xf32>
    %175 = arith.mulf %174, %174 : vector<16x32xf32>
    %cst_60 = arith.constant dense<0.000000e+00> : vector<16xf32>
    %176 = vector.multi_reduction <add>, %175, %cst_60 [1] : vector<16x32xf32> to vector<16xf32>
    %177 = vector.shape_cast %176 : vector<16xf32> to vector<16x1xf32>
    %cst_61 = arith.constant 3.200000e+01 : f32
    %178 = vector.broadcast %cst_61 : f32 to vector<16x1xf32>
    %179 = arith.divf %177, %178 : vector<16x1xf32>
    %180 = vector.broadcast %172 : vector<16x1xf32> to vector<16x32xf32>
    %181 = arith.subf %166, %180 : vector<16x32xf32>
    %cst_62 = arith.constant 9.99999974E-6 : f32
    %182 = vector.broadcast %cst_62 : f32 to vector<16x1xf32>
    %183 = arith.addf %179, %182 : vector<16x1xf32>
    %184 = math.rsqrt %183 : vector<16x1xf32>
    %185 = vector.broadcast %184 : vector<16x1xf32> to vector<16x32xf32>
    %186 = arith.mulf %181, %185 : vector<16x32xf32>
    %187 = vector.broadcast %167 : vector<1x32xf32> to vector<16x32xf32>
    %188 = arith.mulf %186, %187 : vector<16x32xf32>
    %189 = vector.broadcast %168 : vector<1x32xf32> to vector<16x32xf32>
    %190 = arith.addf %188, %189 : vector<16x32xf32>
    %191 = vector.shape_cast %190 : vector<16x32xf32> to vector<2x8x32xf32>
    %c0_63 = arith.constant 0 : index
    %c0_64 = arith.constant 0 : index
    %c0_65 = arith.constant 0 : index
    %192 = vector.load %arg10[%c0_63, %c0_64, %c0_65] : memref<2x8x32xf32, #tpu.memory_space<vmem>>, vector<2x8x32xf32>
    tpu.vector_store %arg10[%c0_63, %c0_64, %c0_65], %191 {strides = array<i32>} : memref<2x8x32xf32, #tpu.memory_space<vmem>>, vector<2x8x32xf32>,
    return
  }
  func.func @transform_0(%arg0: i32) -> (i32, i32, i32) {
    %c0_i32 = arith.constant 0 : i32
    %c0_i32_0 = arith.constant 0 : i32
    %c0_i32_1 = arith.constant 0 : i32
    %c0_i32_2 = arith.constant 0 : i32
    return %c0_i32, %c0_i32_0, %c0_i32_1 : i32, i32, i32
  }
  func.func @transform_1(%arg0: i32) -> (i32, i32) {
    %c0_i32 = arith.constant 0 : i32
    %c0_i32_0 = arith.constant 0 : i32
    %c0_i32_1 = arith.constant 0 : i32
    return %c0_i32, %c0_i32_0 : i32, i32
  }
  func.func @transform_2(%arg0: i32) -> (i32, i32, i32) {
    %c0_i32 = arith.constant 0 : i32
    %c0_i32_0 = arith.constant 0 : i32
    %c0_i32_1 = arith.constant 0 : i32
    return %arg0, %c0_i32, %c0_i32_0 : i32, i32, i32
  }
  func.func @transform_3(%arg0: i32) -> (i32, i32, i32) {
    %c0_i32 = arith.constant 0 : i32
    %c0_i32_0 = arith.constant 0 : i32
    %c0_i32_1 = arith.constant 0 : i32
    return %arg0, %c0_i32, %c0_i32_0 : i32, i32, i32
  }
  func.func @transform_4(%arg0: i32) -> (i32, i32, i32) {
    %c0_i32 = arith.constant 0 : i32
    %c0_i32_0 = arith.constant 0 : i32
    %c0_i32_1 = arith.constant 0 : i32
    return %arg0, %c0_i32, %c0_i32_0 : i32, i32, i32
  }
  func.func @transform_5(%arg0: i32) -> (i32, i32, i32) {
    %c0_i32 = arith.constant 0 : i32
    %c0_i32_0 = arith.constant 0 : i32
    %c0_i32_1 = arith.constant 0 : i32
    return %arg0, %c0_i32, %c0_i32_0 : i32, i32, i32
  }
  func.func @transform_6(%arg0: i32) -> (i32, i32, i32) {
    %c0_i32 = arith.constant 0 : i32
    %c0_i32_0 = arith.constant 0 : i32
    %c0_i32_1 = arith.constant 0 : i32
    return %arg0, %c0_i32, %c0_i32_0 : i32, i32, i32
  }
  func.func @transform_7(%arg0: i32) -> (i32, i32, i32) {
    %c0_i32 = arith.constant 0 : i32
    %c0_i32_0 = arith.constant 0 : i32
    %c0_i32_1 = arith.constant 0 : i32
    return %arg0, %c0_i32, %c0_i32_0 : i32, i32, i32
  }
  func.func @transform_8(%arg0: i32) -> (i32, i32, i32) {
    %c0_i32 = arith.constant 0 : i32
    %c0_i32_0 = arith.constant 0 : i32
    %c0_i32_1 = arith.constant 0 : i32
    return %arg0, %c0_i32, %c0_i32_0 : i32, i32, i32
  }
  func.func @transform_9(%arg0: i32) -> (i32, i32, i32) {
    %c0_i32 = arith.constant 0 : i32
    %c0_i32_0 = arith.constant 0 : i32
    %c0_i32_1 = arith.constant 0 : i32
    %c0_i32_2 = arith.constant 0 : i32
    return %c0_i32, %c0_i32_0, %c0_i32_1 : i32, i32, i32
  }
}

</mosaic_0001>

<llo_original>
// kernel: ernie_rna_onestage.1
$region0: #{ernie_rna_onestage.1}
  #allocation0 [shape = 'u32[]', space=smem, size = 0x4, offset = 0x4, fixed_abs, tag = 'smem constant byte address 0x4 - core index']
  #allocation1 [shape = 'u32[72,128]{1,0:T(1,128)}', space=vmem, size = 0x9000, scoped, tag = 'internal scratch']
  %s0 = inlined_call_operand.vmem [shape: f32[2,8,32], index: 0, kind: input, shape index: {}]
  %s1 = inlined_call_operand.vmem [shape: f32[8,8], index: 1, kind: input, shape index: {}]
  %s2 = inlined_call_operand.vmem [shape: bf16[2,32,96], index: 2, kind: input, shape index: {}]
  %s3 = inlined_call_operand.vmem [shape: f32[2,1,96], index: 3, kind: input, shape index: {}]
  %s4 = inlined_call_operand.vmem [shape: bf16[2,32,32], index: 4, kind: input, shape index: {}]
  %s5 = inlined_call_operand.vmem [shape: bf16[2,32,64], index: 5, kind: input, shape index: {}]
  %s6 = inlined_call_operand.vmem [shape: f32[2,1,64], index: 6, kind: input, shape index: {}]
  %s7 = inlined_call_operand.vmem [shape: bf16[2,64,32], index: 7, kind: input, shape index: {}]
  %s8 = inlined_call_operand.vmem [shape: f32[2,6,32], index: 8, kind: input, shape index: {}]
  %s9 = inlined_call_operand.hbm [shape: f32[2,8,32], index: 9, kind: output, shape index: {}]
  %s10 = sld [smem:[#allocation0]]
  $region73: #{ernie_rna_onestage.1} parent=0
    _
  %s12 = ssub.s32 1, %s10
  %s13 = scalar_select 0, %s12, %s10
  $region1: #{ernie_rna_onestage.1} parent=0
    #allocation2 [shape = 'u8[8192]{0}', space=vmem, size = 0x2000, scoped, tag = 'output window, operand 0, single buffered']
    #allocation3 [shape = 's32[2]{0}', space=sflag, size = 0x8, scoped, tag = 'scoped memory for ernie_rna_onestage.1']
    %14 = vsyncpa [#allocation3], 0
    loop: start=0, step=1, limit=4
    $region2: #{ernie_rna_onestage.1} parent=1 // loop_pre_header
      _
    $region3: #{ernie_rna_onestage.1} parent=1 // loop_header
      %s16 = sphi 0, %s20
      %p17 = scmp.ge.s32.totalorder %s16, 4
      %s24 = sphi 0, %s24
      %s26 = sphi 0, %s24
      %s27 = sphi 0, %s26
      %s41 = sphi 0, %s27
      %s45 = sphi 0, %s45
      %s47 = sphi 0, %s45
      %s48 = sphi 0, %s47
      %s62 = sphi 0, %s48
      %s68 = sphi 0, %s70
      %s71 = sphi 0, %s68
      %s72 = sphi 0, %s71
      %s88 = sphi 0, %s72
      %s94 = sphi 0, %s96
      %s97 = sphi 0, %s94
      %s98 = sphi 0, %s97
      %s114 = sphi 0, %s98
      %s120 = sphi 0, %s122
      %s123 = sphi 0, %s120
      %s124 = sphi 0, %s123
      %s140 = sphi 0, %s124
      %s146 = sphi 0, %s148
      %s149 = sphi 0, %s146
      %s150 = sphi 0, %s149
      %s166 = sphi 0, %s150
      %s172 = sphi 0, %s174
      %s175 = sphi 0, %s172
      %s176 = sphi 0, %s175
      %s192 = sphi 0, %s176
      %s198 = sphi 0, %s200
      %s201 = sphi 0, %s198
      %s202 = sphi 0, %s201
      %s218 = sphi 0, %s202
      %s224 = sphi 0, %s226
      %s227 = sphi 0, %s224
      %s228 = sphi 0, %s227
      %s244 = sphi 0, %s228
      %s248 = sphi 0, %s248
      %s250 = sphi 0, %s248
      %s251 = sphi 0, %s250
      %s265 = sphi 0, %s251
    $region4: #{ernie_rna_onestage.1} parent=1 // loop_header_branch
      %19 = sbr.rel (%p17) target = $region8
    $region5: #{ernie_rna_onestage.1} parent=1 // loop_body
      %s21 = ssub.s32 %s16, 1
      %s22 = ssub.s32 %s16, 2
      %s23 = sadd.s32 %s16, 1
      %s25 = sadd.s32 %s24, 1
      %p28 = scmp.eq.s32.totalorder %s16, 1
      %p29 = scmp.ne.s32.totalorder %s24, %s26
      %p30 = scmp.eq.s32.totalorder %s16, 0
      %p31 = por %p29, %p30
      %p32 = scmp.ne.s32.totalorder %s24, %s26
      %p33 = scmp.eq.s32.totalorder %s21, 1
      %p34 = por %p32, %p33
      %p35 = scmp.ne.s32.totalorder %s26, %s27
      %p36 = scmp.eq.s32.totalorder %s21, 0
      %p37 = por %p35, %p36
      %p38 = scmp.ne.s32.totalorder %s26, %s27
      %p39 = scmp.eq.s32.totalorder %s22, 1
      %p40 = por %p38, %p39
      %p42 = scmp.ne.s32.totalorder %s27, %s41
      %p43 = scmp.eq.s32.totalorder %s22, 0
      %p44 = por %p42, %p43
      %s46 = sadd.s32 %s45, 1
      %p49 = scmp.eq.s32.totalorder %s16, 1
      %p50 = scmp.ne.s32.totalorder %s45, %s47
      %p51 = scmp.eq.s32.totalorder %s16, 0
      %p52 = por %p50, %p51
      %p53 = scmp.ne.s32.totalorder %s45, %s47
      %p54 = scmp.eq.s32.totalorder %s21, 1
      %p55 = por %p53, %p54
      %p56 = scmp.ne.s32.totalorder %s47, %s48
      %p57 = scmp.eq.s32.totalorder %s21, 0
      %p58 = por %p56, %p57
      %p59 = scmp.ne.s32.totalorder %s47, %s48
      %p60 = scmp.eq.s32.totalorder %s22, 1
      %p61 = por %p59, %p60
      %p63 = scmp.ne.s32.totalorder %s48, %s62
      %p64 = scmp.eq.s32.totalorder %s22, 0
      %p65 = por %p63, %p64
      %s66 = ssub.s32 %s16, %s23
      %p67 = scmp.eq.s32.totalorder %s66, 0
      %s69 = sadd.s32 %s68, 1
      %s70 = scalar_select %p67, %s68, %s69
      %p73 = pneg %p67
      %p74 = scmp.eq.s32.totalorder %s16, 1
      %p75 = por %p73, %p74
      %p76 = scmp.ne.s32.totalorder %s68, %s71
      %p77 = scmp.eq.s32.totalorder %s16, 0
      %p78 = por %p76, %p77
      %p79 = scmp.ne.s32.totalorder %s68, %s71
      %p80 = scmp.eq.s32.totalorder %s21, 1
      %p81 = por %p79, %p80
      %p82 = scmp.ne.s32.totalorder %s71, %s72
      %p83 = scmp.eq.s32.totalorder %s21, 0
      %p84 = por %p82, %p83
      %p85 = scmp.ne.s32.totalorder %s71, %s72
      %p86 = scmp.eq.s32.totalorder %s22, 1
      %p87 = por %p85, %p86
      %p89 = scmp.ne.s32.totalorder %s72, %s88
      %p90 = scmp.eq.s32.totalorder %s22, 0
      %p91 = por %p89, %p90
      %s92 = ssub.s32 %s16, %s23
      %p93 = scmp.eq.s32.totalorder %s92, 0
      %s95 = sadd.s32 %s94, 1
      %s96 = scalar_select %p93, %s94, %s95
      %p99 = pneg %p93
      %p100 = scmp.eq.s32.totalorder %s16, 1
      %p101 = por %p99, %p100
      %p102 = scmp.ne.s32.totalorder %s94, %s97
      %p103 = scmp.eq.s32.totalorder %s16, 0
      %p104 = por %p102, %p103
      %p105 = scmp.ne.s32.totalorder %s94, %s97
      %p106 = scmp.eq.s32.totalorder %s21, 1
      %p107 = por %p105, %p106
      %p108 = scmp.ne.s32.totalorder %s97, %s98
      %p109 = scmp.eq.s32.totalorder %s21, 0
      %p110 = por %p108, %p109
      %p111 = scmp.ne.s32.totalorder %s97, %s98
      %p112 = scmp.eq.s32.totalorder %s22, 1
      %p113 = por %p111, %p112
      %p115 = scmp.ne.s32.totalorder %s98, %s114
      %p116 = scmp.eq.s32.totalorder %s22, 0
      %p117 = por %p115, %p116
      %s118 = ssub.s32 %s16, %s23
      %p119 = scmp.eq.s32.totalorder %s118, 0
      %s121 = sadd.s32 %s120, 1
      %s122 = scalar_select %p119, %s120, %s121
      %p125 = pneg %p119
      %p126 = scmp.eq.s32.totalorder %s16, 1
      %p127 = por %p125, %p126
      %p128 = scmp.ne.s32.totalorder %s120, %s123
      %p129 = scmp.eq.s32.totalorder %s16, 0
      %p130 = por %p128, %p129
      %p131 = scmp.ne.s32.totalorder %s120, %s123
      %p132 = scmp.eq.s32.totalorder %s21, 1
      %p133 = por %p131, %p132
      %p134 = scmp.ne.s32.totalorder %s123, %s124
      %p135 = scmp.eq.s32.totalorder %s21, 0
      %p136 = por %p134, %p135
      %p137 = scmp.ne.s32.totalorder %s123, %s124
      %p138 = scmp.eq.s32.totalorder %s22, 1
      %p139 = por %p137, %p138
      %p141 = scmp.ne.s32.totalorder %s124, %s140
      %p142 = scmp.eq.s32.totalorder %s22, 0
      %p143 = por %p141, %p142
      %s144 = ssub.s32 %s16, %s23
      %p145 = scmp.eq.s32.totalorder %s144, 0
      %s147 = sadd.s32 %s146, 1
      %s148 = scalar_select %p145, %s146, %s147
      %p151 = pneg %p145
      %p152 = scmp.eq.s32.totalorder %s16, 1
      %p153 = por %p151, %p152
      %p154 = scmp.ne.s32.totalorder %s146, %s149
      %p155 = scmp.eq.s32.totalorder %s16, 0
      %p156 = por %p154, %p155
      %p157 = scmp.ne.s32.totalorder %s146, %s149
      %p158 = scmp.eq.s32.totalorder %s21, 1
      %p159 = por %p157, %p158
      %p160 = scmp.ne.s32.totalorder %s149, %s150
      %p161 = scmp.eq.s32.totalorder %s21, 0
      %p162 = por %p160, %p161
      %p163 = scmp.ne.s32.totalorder %s149, %s150
      %p164 = scmp.eq.s32.totalorder %s22, 1
      %p165 = por %p163, %p164
      %p167 = scmp.ne.s32.totalorder %s150, %s166
      %p168 = scmp.eq.s32.totalorder %s22, 0
      %p169 = por %p167, %p168
      %s170 = ssub.s32 %s16, %s23
      %p171 = scmp.eq.s32.totalorder %s170, 0
      %s173 = sadd.s32 %s172, 1
      %s174 = scalar_select %p171, %s172, %s173
      %p177 = pneg %p171
      %p178 = scmp.eq.s32.totalorder %s16, 1
      %p179 = por %p177, %p178
      %p180 = scmp.ne.s32.totalorder %s172, %s175
      %p181 = scmp.eq.s32.totalorder %s16, 0
      %p182 = por %p180, %p181
      %p183 = scmp.ne.s32.totalorder %s172, %s175
      %p184 = scmp.eq.s32.totalorder %s21, 1
      %p185 = por %p183, %p184
      %p186 = scmp.ne.s32.totalorder %s175, %s176
      %p187 = scmp.eq.s32.totalorder %s21, 0
      %p188 = por %p186, %p187
      %p189 = scmp.ne.s32.totalorder %s175, %s176
      %p190 = scmp.eq.s32.totalorder %s22, 1
      %p191 = por %p189, %p190
      %p193 = scmp.ne.s32.totalorder %s176, %s192
      %p194 = scmp.eq.s32.totalorder %s22, 0
      %p195 = por %p193, %p194
      %s196 = ssub.s32 %s16, %s23
      %p197 = scmp.eq.s32.totalorder %s196, 0
      %s199 = sadd.s32 %s198, 1
      %s200 = scalar_select %p197, %s198, %s199
      %p203 = pneg %p197
      %p204 = scmp.eq.s32.totalorder %s16, 1
      %p205 = por %p203, %p204
      %p206 = scmp.ne.s32.totalorder %s198, %s201
      %p207 = scmp.eq.s32.totalorder %s16, 0
      %p208 = por %p206, %p207
      %p209 = scmp.ne.s32.totalorder %s198, %s201
      %p210 = scmp.eq.s32.totalorder %s21, 1
      %p211 = por %p209, %p210
      %p212 = scmp.ne.s32.totalorder %s201, %s202
      %p213 = scmp.eq.s32.totalorder %s21, 0
      %p214 = por %p212, %p213
      %p215 = scmp.ne.s32.totalorder %s201, %s202
      %p216 = scmp.eq.s32.totalorder %s22, 1
      %p217 = por %p215, %p216
      %p219 = scmp.ne.s32.totalorder %s202, %s218
      %p220 = scmp.eq.s32.totalorder %s22, 0
      %p221 = por %p219, %p220
      %s222 = ssub.s32 %s16, %s23
      %p223 = scmp.eq.s32.totalorder %s222, 0
      %s225 = sadd.s32 %s224, 1
      %s226 = scalar_select %p223, %s224, %s225
      %p229 = pneg %p223
      %p230 = scmp.eq.s32.totalorder %s16, 1
      %p231 = por %p229, %p230
      %p232 = scmp.ne.s32.totalorder %s224, %s227
      %p233 = scmp.eq.s32.totalorder %s16, 0
      %p234 = por %p232, %p233
      %p235 = scmp.ne.s32.totalorder %s224, %s227
      %p236 = scmp.eq.s32.totalorder %s21, 1
      %p237 = por %p235, %p236
      %p238 = scmp.ne.s32.totalorder %s227, %s228
      %p239 = scmp.eq.s32.totalorder %s21, 0
      %p240 = por %p238, %p239
      %p241 = scmp.ne.s32.totalorder %s227, %s228
      %p242 = scmp.eq.s32.totalorder %s22, 1
      %p243 = por %p241, %p242
      %p245 = scmp.ne.s32.totalorder %s228, %s244
      %p246 = scmp.eq.s32.totalorder %s22, 0
      %p247 = por %p245, %p246
      %s249 = sadd.s32 %s248, 1
      %p252 = scmp.eq.s32.totalorder %s16, 1
      %p253 = scmp.ne.s32.totalorder %s248, %s250
      %p254 = scmp.eq.s32.totalorder %s16, 0
      %p255 = por %p253, %p254
      %p256 = scmp.ne.s32.totalorder %s248, %s250
      %p257 = scmp.eq.s32.totalorder %s21, 1
      %p258 = por %p256, %p257
      %p259 = scmp.ne.s32.totalorder %s250, %s251
      %p260 = scmp.eq.s32.totalorder %s21, 0
      %p261 = por %p259, %p260
      %p262 = scmp.ne.s32.totalorder %s250, %s251
      %p263 = scmp.eq.s32.totalorder %s22, 1
      %p264 = por %p262, %p263
      %p266 = scmp.ne.s32.totalorder %s251, %s265
      %p267 = scmp.eq.s32.totalorder %s22, 0
      %p268 = por %p266, %p267
      %p269 = scmp.le.s32.totalorder 1, %s16
      %p270 = scmp.lt.s32.totalorder %s16, 3
      %p271 = pnand %p269, %p270
      %p272 = pneg %p271
      // Predicated region
      $region9: #{ernie_rna_onestage.1} parent=5 // pred_check
        _
      $region10: #{ernie_rna_onestage.1} parent=5 // pred_check_branch
        %274 = sbr.rel (%p271) target = $region12
      $region11: #{ernie_rna_onestage.1} parent=5 // pred_region
        %s275 = ssub.s32 %s16, 1
        // Predicated region
        $region13: #{ernie_rna_onestage.1} parent=11 // pred_check
          %p276 = pneg %p37
        $region14: #{ernie_rna_onestage.1} parent=11 // pred_check_branch
          %278 = sbr.rel (%p276) target = $region16
        $region15: #{ernie_rna_onestage.1} parent=11 // pred_region
          _
        $region16: #{ernie_rna_onestage.1} parent=11 // pred_fallthru
          _
        // Predicated region
        $region17: #{ernie_rna_onestage.1} parent=11 // pred_check
          %p279 = pneg %p58
        $region18: #{ernie_rna_onestage.1} parent=11 // pred_check_branch
          %281 = sbr.rel (%p279) target = $region20
        $region19: #{ernie_rna_onestage.1} parent=11 // pred_region
          _
        $region20: #{ernie_rna_onestage.1} parent=11 // pred_fallthru
          _
      $region12: #{ernie_rna_onestage.1} parent=5 // pred_fallthru
        _
      %p282 = scmp.lt.s32.totalorder %s16, 2
      // Predicated region
      $region21: #{ernie_rna_onestage.1} parent=5 // pred_check
        %p283 = pneg %p282
      $region22: #{ernie_rna_onestage.1} parent=5 // pred_check_branch
        %285 = sbr.rel (%p283) target = $region24
      $region23: #{ernie_rna_onestage.1} parent=5 // pred_region
        // Predicated region
        $region25: #{ernie_rna_onestage.1} parent=23 // pred_check
          %p286 = pneg %p78
        $region26: #{ernie_rna_onestage.1} parent=23 // pred_check_branch
          %288 = sbr.rel (%p286) target = $region28
        $region27: #{ernie_rna_onestage.1} parent=23 // pred_region
          %p289 = scmp.lt.s32.totalorder %s16, 1
          %s290 = scalar_select %p289, %s16, 1
          %s291 = smul.addr %s290, 4
          %s292 = smul.addr %s291, 4
          %s293 = scalar_lea.vmem %s2, %s292
        $region28: #{ernie_rna_onestage.1} parent=23 // pred_fallthru
          _
        // Predicated region
        $region29: #{ernie_rna_onestage.1} parent=23 // pred_check
          %p294 = pneg %p104
        $region30: #{ernie_rna_onestage.1} parent=23 // pred_check_branch
          %296 = sbr.rel (%p294) target = $region32
        $region31: #{ernie_rna_onestage.1} parent=23 // pred_region
          %p297 = scmp.lt.s32.totalorder %s16, 1
          %s298 = scalar_select %p297, %s16, 1
          %s299 = scalar_lea.vmem %s3, %s298
        $region32: #{ernie_rna_onestage.1} parent=23 // pred_fallthru
          _
        // Predicated region
        $region33: #{ernie_rna_onestage.1} parent=23 // pred_check
          %p300 = pneg %p130
        $region34: #{ernie_rna_onestage.1} parent=23 // pred_check_branch
          %302 = sbr.rel (%p300) target = $region36
        $region35: #{ernie_rna_onestage.1} parent=23 // pred_region
          %p303 = scmp.lt.s32.totalorder %s16, 1
          %s304 = scalar_select %p303, %s16, 1
          %s305 = smul.addr %s304, 4
          %s306 = smul.addr %s305, 4
          %s307 = scalar_lea.vmem %s4, %s306
        $region36: #{ernie_rna_onestage.1} parent=23 // pred_fallthru
          _
        // Predicated region
        $region37: #{ernie_rna_onestage.1} parent=23 // pred_check
          %p308 = pneg %p156
        $region38: #{ernie_rna_onestage.1} parent=23 // pred_check_branch
          %310 = sbr.rel (%p308) target = $region40
        $region39: #{ernie_rna_onestage.1} parent=23 // pred_region
          %p311 = scmp.lt.s32.totalorder %s16, 1
          %s312 = scalar_select %p311, %s16, 1
          %s313 = smul.addr %s312, 4
          %s314 = smul.addr %s313, 4
          %s315 = scalar_lea.vmem %s5, %s314
        $region40: #{ernie_rna_onestage.1} parent=23 // pred_fallthru
          _
        // Predicated region
        $region41: #{ernie_rna_onestage.1} parent=23 // pred_check
          %p316 = pneg %p182
        $region42: #{ernie_rna_onestage.1} parent=23 // pred_check_branch
          %318 = sbr.rel (%p316) target = $region44
        $region43: #{ernie_rna_onestage.1} parent=23 // pred_region
          %p319 = scmp.lt.s32.totalorder %s16, 1
          %s320 = scalar_select %p319, %s16, 1
          %s321 = scalar_lea.vmem %s6, %s320
        $region44: #{ernie_rna_onestage.1} parent=23 // pred_fallthru
          _
        // Predicated region
        $region45: #{ernie_rna_onestage.1} parent=23 // pred_check
          %p322 = pneg %p208
        $region46: #{ernie_rna_onestage.1} parent=23 // pred_check_branch
          %324 = sbr.rel (%p322) target = $region48
        $region47: #{ernie_rna_onestage.1} parent=23 // pred_region
          %p325 = scmp.lt.s32.totalorder %s16, 1
          %s326 = scalar_select %p325, %s16, 1
          %s327 = smul.addr %s326, 8
          %s328 = smul.addr %s327, 4
          %s329 = scalar_lea.vmem %s7, %s328
        $region48: #{ernie_rna_onestage.1} parent=23 // pred_fallthru
          _
        // Predicated region
        $region49: #{ernie_rna_onestage.1} parent=23 // pred_check
          %p330 = pneg %p234
        $region50: #{ernie_rna_onestage.1} parent=23 // pred_check_branch
          %332 = sbr.rel (%p330) target = $region52
        $region51: #{ernie_rna_onestage.1} parent=23 // pred_region
          %p333 = scmp.lt.s32.totalorder %s16, 1
          %s334 = scalar_select %p333, %s16, 1
          %s335 = smul.addr %s334, 8
          %s336 = scalar_lea.vmem %s8, %s335
        $region52: #{ernie_rna_onestage.1} parent=23 // pred_fallthru
          _
      $region24: #{ernie_rna_onestage.1} parent=5 // pred_fallthru
        _
      %p337 = scmp.le.s32.totalorder 1, %s16
      %p338 = scmp.lt.s32.totalorder %s16, 3
      %p339 = pnand %p337, %p338
      %p340 = pneg %p339
      // Predicated region
      $region53: #{ernie_rna_onestage.1} parent=5 // pred_check
        _
      $region54: #{ernie_rna_onestage.1} parent=5 // pred_check_branch
        %342 = sbr.rel (%p339) target = $region56
      $region55: #{ernie_rna_onestage.1} parent=5 // pred_region
        %s343 = ssub.s32 %s16, 1
        %p344 = pneg %p37
        %p345 = pneg %p34
        %p346 = pneg %p58
        %p347 = pneg %p55
        %p348 = scmp.lt.s32.totalorder %s21, 1
        %s349 = scalar_select %p348, %s21, 1
        %s350 = smul.addr %s349, 4
        %s351 = smul.addr %s350, 4
        %s352 = scalar_lea.vmem %s2, %s351
        %p353 = pneg %p84
        %p354 = pneg %p81
        %p355 = scmp.lt.s32.totalorder %s21, 1
        %s356 = scalar_select %p355, %s21, 1
        %s357 = scalar_lea.vmem %s3, %s356
        %p358 = pneg %p110
        %p359 = pneg %p107
        %p360 = scmp.lt.s32.totalorder %s21, 1
        %s361 = scalar_select %p360, %s21, 1
        %s362 = smul.addr %s361, 4
        %s363 = smul.addr %s362, 4
        %s364 = scalar_lea.vmem %s4, %s363
        %p365 = pneg %p136
        %p366 = pneg %p133
        %p367 = scmp.lt.s32.totalorder %s21, 1
        %s368 = scalar_select %p367, %s21, 1
        %s369 = smul.addr %s368, 4
        %s370 = smul.addr %s369, 4
        %s371 = scalar_lea.vmem %s5, %s370
        %p372 = pneg %p162
        %p373 = pneg %p159
        %p374 = scmp.lt.s32.totalorder %s21, 1
        %s375 = scalar_select %p374, %s21, 1
        %s376 = scalar_lea.vmem %s6, %s375
        %p377 = pneg %p188
        %p378 = pneg %p185
        %p379 = scmp.lt.s32.totalorder %s21, 1
        %s380 = scalar_select %p379, %s21, 1
        %s381 = smul.addr %s380, 8
        %s382 = smul.addr %s381, 4
        %s383 = scalar_lea.vmem %s7, %s382
        %p384 = pneg %p214
        %p385 = pneg %p211
        %p386 = scmp.lt.s32.totalorder %s21, 1
        %s387 = scalar_select %p386, %s21, 1
        %s388 = smul.addr %s387, 8
        %s389 = scalar_lea.vmem %s8, %s388
        %p390 = pneg %p240
        %p391 = pneg %p237
        %p392 = pneg %p261
        %p393 = pneg %p258
        %p394 = scmp.lt.s32.totalorder %s21, 1
        %s395 = scalar_select %p394, %s21, 1
        %s396 = smul.addr %s395, 4
        %s397 = smul.addr %s396, 4
        %s398 = scalar_lea.vmem %s2, %s397
        %p399 = scmp.lt.s32.totalorder %s21, 1
        %s400 = scalar_select %p399, %s21, 1
        %s401 = scalar_lea.vmem %s3, %s400
        %p402 = scmp.lt.s32.totalorder %s21, 1
        %s403 = scalar_select %p402, %s21, 1
        %s404 = smul.addr %s403, 4
        %s405 = smul.addr %s404, 4
        %s406 = scalar_lea.vmem %s4, %s405
        %p407 = scmp.lt.s32.totalorder %s21, 1
        %s408 = scalar_select %p407, %s21, 1
        %s409 = smul.addr %s408, 4
        %s410 = smul.addr %s409, 4
        %s411 = scalar_lea.vmem %s5, %s410
        %p412 = scmp.lt.s32.totalorder %s21, 1
        %s413 = scalar_select %p412, %s21, 1
        %s414 = scalar_lea.vmem %s6, %s413
        %p415 = scmp.lt.s32.totalorder %s21, 1
        %s416 = scalar_select %p415, %s21, 1
        %s417 = smul.addr %s416, 8
        %s418 = smul.addr %s417, 4
        %s419 = scalar_lea.vmem %s7, %s418
        %p420 = scmp.lt.s32.totalorder %s21, 1
        %s421 = scalar_select %p420, %s21, 1
        %s422 = smul.addr %s421, 8
        %s423 = scalar_lea.vmem %s8, %s422
        %p425 = scmp.eq.s32.totalorder %s21, 0
        // Predicated region
        $region57: #{ernie_rna_onestage.1} parent=55 // pred_check
          %p426 = pneg %p425
        $region58: #{ernie_rna_onestage.1} parent=55 // pred_check_branch
          %428 = sbr.rel (%p426) target = $region60
        $region59: #{ernie_rna_onestage.1} parent=55 // pred_region
          %v429 = vld [vmem:[%s0] sm:$0xff]
          %v430 = vld [vmem:[%s0 + $0x8] sm:$0xff]
          %vm431 = vcmask 261120
          %432 = vst.msk [vmem:[#allocation2] sm:$0xff] %vm431, %v429
          %433 = vst.msk [vmem:[#allocation2 + $0x8] sm:$0xff] %vm431, %v430
        $region60: #{ernie_rna_onestage.1} parent=55 // pred_fallthru
          _
        %v434 = vld [vmem:[#allocation2] sm:$0xff]
        %v435 = vld [vmem:[#allocation2 + $0x8] sm:$0xff]
        %v436 = vld [vmem:[%s1] sm:$0xff]
        %v437 = vld [vmem:[%s423] sm:$0x3f]
        %v438 = vpack.c.bf16 %v435, %v434
        %v439 = vld [vmem:[%s398] sm:$0xf]
        %v440 = vld [vmem:[%s398 + $0x4] sm:$0xf]
        %v441 = vld [vmem:[%s398 + $0x8] sm:$0xf]
        %v442 = vld [vmem:[%s398 + $0xc] sm:$0xf]
        %v443 = vld [vmem:[%s401] sm:$0x1]
        %v445 = vperm.slane %v443, 0
        %v451 = vunpack.c.l.b16 %v439
        %v452 = vunpack.c.l.b16 %v440
        %v453 = vunpack.c.l.b16 %v441
        %v454 = vunpack.c.l.b16 %v442
        %v455 = vpack.c.b16 %v452, %v451
        %v456 = vpack.c.b16 %v454, %v453
        %vm459 = vcmask 261120
        %v461 = vsel %vm459, %v438, 0
        %463 = vmatpush.bf16.msra.mxu0 0
        %464 = vmatpush.bf16.msra.mxu0 0
        %465 = vmatpush.bf16.msra.mxu0 0
        %466 = vmatpush.bf16.msra.mxu0 0
        %467 = vmatpush.bf16.msra.mxu0 0
        %468 = vmatpush.bf16.msra.mxu0 0
        %469 = vmatpush.bf16.msra.mxu0 %v456
        %470 = vmatpush.bf16.msra.mxu0 %v455
        %471 = vmatmul.bf16.gmra.mxu0 %v461
        %v472 = vpop.f32.mrf.mxu0
        %v473 = vadd.f32 %v445, %v472
        %v474 = vpop.f32.mrf.mxu0
        %v475 = vadd.f32 %v445, %v474
        %476 = vdwg.mxu0
        %478 = vrot.lane.b32.xlu0 %v473, 96
        %v479 = vpop.permute.xlu0 %478
        %vm480 = vcmask 64512
        %v481 = vsel %vm480, %v473, 0
        %v483 = vsel %vm480, %v479, 0
        %485 = vmatpush.xpose.msra.mxu0 0.0
        %486 = vmatpush.xpose.msra.mxu0 0.0
        %487 = vmatpush.xpose.msra.mxu0 0.0
        %488 = vmatpush.xpose.msra.mxu0 0.0
        %489 = vmatpush.xpose.msra.mxu0 0.0
        %490 = vmatpush.xpose.msra.mxu0 0.0
        %491 = vmatpush.xpose.msra.mxu0 0.0
        %492 = vmatpush.xpose.msra.mxu0 0.0
        %493 = vmatpush.xpose.msra.mxu0 0.0
        %494 = vmatpush.xpose.msra.mxu0 0.0
        %495 = vmatpush.xpose.msra.mxu0 0.0
        %496 = vmatpush.xpose.msra.mxu0 0.0
        %497 = vmatpush.xpose.msra.mxu0 0.0
        %498 = vmatpush.xpose.msra.mxu0 0.0
        %499 = vmatpush.xpose.msra.mxu0 0.0
        %500 = vmatpush.xpose.msra.mxu0 %v483
        %501 = vmatmul.f32.gmra.mxu0 %v481
        %v502 = vpop.f32.mrf.mxu0
        %v503 = vadd.f32 %v436, %v502
        %504 = vdwg.mxu0
        %506 = vrot.lane.b32.xlu0 %v475, 96
        %v507 = vpop.permute.xlu0 %506
        %v508 = vsel %vm480, %v475, 0
        %v510 = vsel %vm480, %v507, 0
        %512 = vmatpush.xpose.msra.mxu0 0.0
        %513 = vmatpush.xpose.msra.mxu0 0.0
        %514 = vmatpush.xpose.msra.mxu0 0.0
        %515 = vmatpush.xpose.msra.mxu0 0.0
        %516 = vmatpush.xpose.msra.mxu0 0.0
        %517 = vmatpush.xpose.msra.mxu0 0.0
        %518 = vmatpush.xpose.msra.mxu0 0.0
        %519 = vmatpush.xpose.msra.mxu0 0.0
        %520 = vmatpush.xpose.msra.mxu0 0.0
        %521 = vmatpush.xpose.msra.mxu0 0.0
        %522 = vmatpush.xpose.msra.mxu0 0.0
        %523 = vmatpush.xpose.msra.mxu0 0.0
        %524 = vmatpush.xpose.msra.mxu0 0.0
        %525 = vmatpush.xpose.msra.mxu0 0.0
        %526 = vmatpush.xpose.msra.mxu0 0.0
        %527 = vmatpush.xpose.msra.mxu0 %v510
        %528 = vmatmul.f32.gmra.mxu0 %v508
        %v529 = vpop.f32.mrf.mxu0
        %v530 = vadd.f32 %v436, %v529
        %531 = vdwg.mxu0
        %v532 = vsel %vm480, %v503, -inf
        %533 = vmax.xlane.f32.xlu0 %v532
        %v534 = vpop.xlane.xlu0 %533
        %v535 = vsel %vm480, %v530, -inf
        %536 = vmax.xlane.f32.xlu0 %v535
        %v537 = vpop.xlane.xlu0 %536
        %v538 = vsub.f32 %v503, %v534
        %v539 = vsub.f32 %v530, %v537
        %v540 = vmul.f32 %v538, 1.442695
        %v541 = vpow.pop %v540
        %v542 = vmul.f32 %v539, 1.442695
        %v543 = vpow.pop %v542
        %v544 = vsel %vm480, %v541, 0.0
        %545 = vadd.xlane.f32.xlu0 %v544
        %v546 = vpop.xlane.xlu0 %545
        %v547 = vsel %vm480, %v543, 0.0
        %548 = vadd.xlane.f32.xlu0 %v547
        %v549 = vpop.xlane.xlu0 %548
        %v550 = vrcp.pop %v546
        %v551 = vmul.f32 %v546, %v550
        %v552 = vsub.f32 1.0, %v551
        %v553 = vmul.f32 %v550, %v552
        %v554 = vadd.f32 %v550, %v553
        %vm555 = vweird.f32 %v546
        %vm556 = vweird.f32 %v550
        %vm557 = vmor %vm555, %vm556
        %v558 = vsel %vm557, %v550, %v554
        %v559 = vand.u32 2147483647, %v546
        %vm560 = vcmp.eq.f32.partialorder %v559, 8.507059e+37
        %v561 = vand.u32 %v546, 2147483648
        %v562 = vor.u32 1.1754944e-38, %v561
        %v563 = vsel %vm560, %v562, %v558
        %v564 = vmul.f32 %v541, %v563
        %v565 = vrcp.pop %v549
        %v566 = vmul.f32 %v549, %v565
        %v567 = vsub.f32 1.0, %v566
        %v568 = vmul.f32 %v565, %v567
        %v569 = vadd.f32 %v565, %v568
        %vm570 = vweird.f32 %v549
        %vm571 = vweird.f32 %v565
        %vm572 = vmor %vm570, %vm571
        %v573 = vsel %vm572, %v565, %v569
        %v574 = vand.u32 2147483647, %v549
        %vm575 = vcmp.eq.f32.partialorder %v574, 8.507059e+37
        %v576 = vand.u32 %v549, 2147483648
        %v577 = vor.u32 1.1754944e-38, %v576
        %v578 = vsel %vm575, %v577, %v573
        %v579 = vmul.f32 %v543, %v578
        %580 = vrot.lane.b32.xlu0 %v473, 64
        %v581 = vpop.permute.xlu0 %580
        %v584 = vsel %vm480, %v564, 0
        %586 = vmatpush.msra.mxu0 0.0
        %587 = vmatpush.msra.mxu0 0.0
        %588 = vmatpush.msra.mxu0 0.0
        %589 = vmatpush.msra.mxu0 0.0
        %590 = vmatpush.msra.mxu0 0.0
        %591 = vmatpush.msra.mxu0 0.0
        %592 = vmatpush.msra.mxu0 0.0
        %593 = vmatpush.msra.mxu0 0.0
        %594 = vmatpush.msra.mxu0 0.0
        %595 = vmatpush.msra.mxu0 0.0
        %596 = vmatpush.msra.mxu0 0.0
        %597 = vmatpush.msra.mxu0 0.0
        %598 = vmatpush.msra.mxu0 0.0
        %599 = vmatpush.msra.mxu0 0.0
        %600 = vmatpush.msra.mxu0 0.0
        %601 = vmatpush.msra.mxu0 %v581
        %602 = vmatmul.f32.gmra.mxu0 %v584
        %v603 = vpop.f32.mrf.mxu0
        %v604 = vadd.f32 0.0, %v603
        %605 = vdwg.mxu0
        %606 = vrot.lane.b32.xlu0 %v475, 64
        %v607 = vpop.permute.xlu0 %606
        %v610 = vsel %vm480, %v579, 0
        %612 = vmatpush.msra.mxu0 0.0
        %613 = vmatpush.msra.mxu0 0.0
        %614 = vmatpush.msra.mxu0 0.0
        %615 = vmatpush.msra.mxu0 0.0
        %616 = vmatpush.msra.mxu0 0.0
        %617 = vmatpush.msra.mxu0 0.0
        %618 = vmatpush.msra.mxu0 0.0
        %619 = vmatpush.msra.mxu0 0.0
        %620 = vmatpush.msra.mxu0 0.0
        %621 = vmatpush.msra.mxu0 0.0
        %622 = vmatpush.msra.mxu0 0.0
        %623 = vmatpush.msra.mxu0 0.0
        %624 = vmatpush.msra.mxu0 0.0
        %625 = vmatpush.msra.mxu0 0.0
        %626 = vmatpush.msra.mxu0 0.0
        %627 = vmatpush.msra.mxu0 %v607
        %628 = vmatmul.f32.gmra.mxu0 %v610
        %v629 = vpop.f32.mrf.mxu0
        %v630 = vadd.f32 0.0, %v629
        %631 = vdwg.mxu0
        %632 = vrot.lane.b32.xlu0 %v473, 120
        %v633 = vpop.permute.xlu0 %632
        %634 = vrot.lane.b32.xlu0 %v473, 88
        %v635 = vpop.permute.xlu0 %634
        %v636 = vsel %vm480, %v633, 0
        %v638 = vsel %vm480, %v635, 0
        %640 = vmatpush.xpose.msra.mxu0 0.0
        %641 = vmatpush.xpose.msra.mxu0 0.0
        %642 = vmatpush.xpose.msra.mxu0 0.0
        %643 = vmatpush.xpose.msra.mxu0 0.0
        %644 = vmatpush.xpose.msra.mxu0 0.0
        %645 = vmatpush.xpose.msra.mxu0 0.0
        %646 = vmatpush.xpose.msra.mxu0 0.0
        %647 = vmatpush.xpose.msra.mxu0 0.0
        %648 = vmatpush.xpose.msra.mxu0 0.0
        %649 = vmatpush.xpose.msra.mxu0 0.0
        %650 = vmatpush.xpose.msra.mxu0 0.0
        %651 = vmatpush.xpose.msra.mxu0 0.0
        %652 = vmatpush.xpose.msra.mxu0 0.0
        %653 = vmatpush.xpose.msra.mxu0 0.0
        %654 = vmatpush.xpose.msra.mxu0 0.0
        %655 = vmatpush.xpose.msra.mxu0 %v638
        %656 = vmatmul.f32.gmra.mxu0 %v636
        %v657 = vpop.f32.mrf.mxu0
        %v658 = vadd.f32 %v436, %v657
        %659 = vdwg.mxu0
        %660 = vrot.lane.b32.xlu0 %v475, 120
        %v661 = vpop.permute.xlu0 %660
        %662 = vrot.lane.b32.xlu0 %v475, 88
        %v663 = vpop.permute.xlu0 %662
        %v664 = vsel %vm480, %v661, 0
        %v666 = vsel %vm480, %v663, 0
        %668 = vmatpush.xpose.msra.mxu0 0.0
        %669 = vmatpush.xpose.msra.mxu0 0.0
        %670 = vmatpush.xpose.msra.mxu0 0.0
        %671 = vmatpush.xpose.msra.mxu0 0.0
        %672 = vmatpush.xpose.msra.mxu0 0.0
        %673 = vmatpush.xpose.msra.mxu0 0.0
        %674 = vmatpush.xpose.msra.mxu0 0.0
        %675 = vmatpush.xpose.msra.mxu0 0.0
        %676 = vmatpush.xpose.msra.mxu0 0.0
        %677 = vmatpush.xpose.msra.mxu0 0.0
        %678 = vmatpush.xpose.msra.mxu0 0.0
        %679 = vmatpush.xpose.msra.mxu0 0.0
        %680 = vmatpush.xpose.msra.mxu0 0.0
        %681 = vmatpush.xpose.msra.mxu0 0.0
        %682 = vmatpush.xpose.msra.mxu0 0.0
        %683 = vmatpush.xpose.msra.mxu0 %v666
        %684 = vmatmul.f32.gmra.mxu0 %v664
        %v685 = vpop.f32.mrf.mxu0
        %v686 = vadd.f32 %v436, %v685
        %687 = vdwg.mxu0
        %v688 = vsel %vm480, %v658, -inf
        %689 = vmax.xlane.f32.xlu0 %v688
        %v690 = vpop.xlane.xlu0 %689
        %v691 = vsel %vm480, %v686, -inf
        %692 = vmax.xlane.f32.xlu0 %v691
        %v693 = vpop.xlane.xlu0 %692
        %v694 = vsub.f32 %v658, %v690
        %v695 = vsub.f32 %v686, %v693
        %v696 = vmul.f32 %v694, 1.442695
        %v697 = vpow.pop %v696
        %v698 = vmul.f32 %v695, 1.442695
        %v699 = vpow.pop %v698
        %v700 = vsel %vm480, %v697, 0.0
        %701 = vadd.xlane.f32.xlu0 %v700
        %v702 = vpop.xlane.xlu0 %701
        %v703 = vsel %vm480, %v699, 0.0
        %704 = vadd.xlane.f32.xlu0 %v703
        %v705 = vpop.xlane.xlu0 %704
        %v706 = vrcp.pop %v702
        %v707 = vmul.f32 %v702, %v706
        %v708 = vsub.f32 1.0, %v707
        %v709 = vmul.f32 %v706, %v708
        %v710 = vadd.f32 %v706, %v709
        %vm711 = vweird.f32 %v702
        %vm712 = vweird.f32 %v706
        %vm713 = vmor %vm711, %vm712
        %v714 = vsel %vm713, %v706, %v710
        %v715 = vand.u32 2147483647, %v702
        %vm716 = vcmp.eq.f32.partialorder %v715, 8.507059e+37
        %v717 = vand.u32 %v702, 2147483648
        %v718 = vor.u32 1.1754944e-38, %v717
        %v719 = vsel %vm716, %v718, %v714
        %v720 = vmul.f32 %v697, %v719
        %v721 = vrcp.pop %v705
        %v722 = vmul.f32 %v705, %v721
        %v723 = vsub.f32 1.0, %v722
        %v724 = vmul.f32 %v721, %v723
        %v725 = vadd.f32 %v721, %v724
        %vm726 = vweird.f32 %v705
        %vm727 = vweird.f32 %v721
        %vm728 = vmor %vm726, %vm727
        %v729 = vsel %vm728, %v721, %v725
        %v730 = vand.u32 2147483647, %v705
        %vm731 = vcmp.eq.f32.partialorder %v730, 8.507059e+37
        %v732 = vand.u32 %v705, 2147483648
        %v733 = vor.u32 1.1754944e-38, %v732
        %v734 = vsel %vm731, %v733, %v729
        %v735 = vmul.f32 %v699, %v734
        %736 = vrot.lane.b32.xlu0 %v473, 56
        %v737 = vpop.permute.xlu0 %736
        %v740 = vsel %vm480, %v720, 0
        %742 = vmatpush.msra.mxu0 0.0
        %743 = vmatpush.msra.mxu0 0.0
        %744 = vmatpush.msra.mxu0 0.0
        %745 = vmatpush.msra.mxu0 0.0
        %746 = vmatpush.msra.mxu0 0.0
        %747 = vmatpush.msra.mxu0 0.0
        %748 = vmatpush.msra.mxu0 0.0
        %749 = vmatpush.msra.mxu0 0.0
        %750 = vmatpush.msra.mxu0 0.0
        %751 = vmatpush.msra.mxu0 0.0
        %752 = vmatpush.msra.mxu0 0.0
        %753 = vmatpush.msra.mxu0 0.0
        %754 = vmatpush.msra.mxu0 0.0
        %755 = vmatpush.msra.mxu0 0.0
        %756 = vmatpush.msra.mxu0 0.0
        %757 = vmatpush.msra.mxu0 %v737
        %758 = vmatmul.f32.gmra.mxu0 %v740
        %v759 = vpop.f32.mrf.mxu0
        %v760 = vadd.f32 0.0, %v759
        %761 = vdwg.mxu0
        %762 = vrot.lane.b32.xlu0 %v475, 56
        %v763 = vpop.permute.xlu0 %762
        %v766 = vsel %vm480, %v735, 0
        %768 = vmatpush.msra.mxu0 0.0
        %769 = vmatpush.msra.mxu0 0.0
        %770 = vmatpush.msra.mxu0 0.0
        %771 = vmatpush.msra.mxu0 0.0
        %772 = vmatpush.msra.mxu0 0.0
        %773 = vmatpush.msra.mxu0 0.0
        %774 = vmatpush.msra.mxu0 0.0
        %775 = vmatpush.msra.mxu0 0.0
        %776 = vmatpush.msra.mxu0 0.0
        %777 = vmatpush.msra.mxu0 0.0
        %778 = vmatpush.msra.mxu0 0.0
        %779 = vmatpush.msra.mxu0 0.0
        %780 = vmatpush.msra.mxu0 0.0
        %781 = vmatpush.msra.mxu0 0.0
        %782 = vmatpush.msra.mxu0 0.0
        %783 = vmatpush.msra.mxu0 %v763
        %784 = vmatmul.f32.gmra.mxu0 %v766
        %v785 = vpop.f32.mrf.mxu0
        %v786 = vadd.f32 0.0, %v785
        %787 = vdwg.mxu0
        %788 = vrot.lane.b32.xlu0 %v473, 112
        %v789 = vpop.permute.xlu0 %788
        %790 = vrot.lane.b32.xlu0 %v473, 80
        %v791 = vpop.permute.xlu0 %790
        %v792 = vsel %vm480, %v789, 0
        %v794 = vsel %vm480, %v791, 0
        %796 = vmatpush.xpose.msra.mxu0 0.0
        %797 = vmatpush.xpose.msra.mxu0 0.0
        %798 = vmatpush.xpose.msra.mxu0 0.0
        %799 = vmatpush.xpose.msra.mxu0 0.0
        %800 = vmatpush.xpose.msra.mxu0 0.0
        %801 = vmatpush.xpose.msra.mxu0 0.0
        %802 = vmatpush.xpose.msra.mxu0 0.0
        %803 = vmatpush.xpose.msra.mxu0 0.0
        %804 = vmatpush.xpose.msra.mxu0 0.0
        %805 = vmatpush.xpose.msra.mxu0 0.0
        %806 = vmatpush.xpose.msra.mxu0 0.0
        %807 = vmatpush.xpose.msra.mxu0 0.0
        %808 = vmatpush.xpose.msra.mxu0 0.0
        %809 = vmatpush.xpose.msra.mxu0 0.0
        %810 = vmatpush.xpose.msra.mxu0 0.0
        %811 = vmatpush.xpose.msra.mxu0 %v794
        %812 = vmatmul.f32.gmra.mxu0 %v792
        %v813 = vpop.f32.mrf.mxu0
        %v814 = vadd.f32 %v436, %v813
        %815 = vdwg.mxu0
        %816 = vrot.lane.b32.xlu0 %v475, 112
        %v817 = vpop.permute.xlu0 %816
        %818 = vrot.lane.b32.xlu0 %v475, 80
        %v819 = vpop.permute.xlu0 %818
        %v820 = vsel %vm480, %v817, 0
        %v822 = vsel %vm480, %v819, 0
        %824 = vmatpush.xpose.msra.mxu0 0.0
        %825 = vmatpush.xpose.msra.mxu0 0.0
        %826 = vmatpush.xpose.msra.mxu0 0.0
        %827 = vmatpush.xpose.msra.mxu0 0.0
        %828 = vmatpush.xpose.msra.mxu0 0.0
        %829 = vmatpush.xpose.msra.mxu0 0.0
        %830 = vmatpush.xpose.msra.mxu0 0.0
        %831 = vmatpush.xpose.msra.mxu0 0.0
        %832 = vmatpush.xpose.msra.mxu0 0.0
        %833 = vmatpush.xpose.msra.mxu0 0.0
        %834 = vmatpush.xpose.msra.mxu0 0.0
        %835 = vmatpush.xpose.msra.mxu0 0.0
        %836 = vmatpush.xpose.msra.mxu0 0.0
        %837 = vmatpush.xpose.msra.mxu0 0.0
        %838 = vmatpush.xpose.msra.mxu0 0.0
        %839 = vmatpush.xpose.msra.mxu0 %v822
        %840 = vmatmul.f32.gmra.mxu0 %v820
        %v841 = vpop.f32.mrf.mxu0
        %v842 = vadd.f32 %v436, %v841
        %843 = vdwg.mxu0
        %v844 = vsel %vm480, %v814, -inf
        %845 = vmax.xlane.f32.xlu0 %v844
        %v846 = vpop.xlane.xlu0 %845
        %v847 = vsel %vm480, %v842, -inf
        %848 = vmax.xlane.f32.xlu0 %v847
        %v849 = vpop.xlane.xlu0 %848
        %v850 = vsub.f32 %v814, %v846
        %v851 = vsub.f32 %v842, %v849
        %v852 = vmul.f32 %v850, 1.442695
        %v853 = vpow.pop %v852
        %v854 = vmul.f32 %v851, 1.442695
        %v855 = vpow.pop %v854
        %v856 = vsel %vm480, %v853, 0.0
        %857 = vadd.xlane.f32.xlu0 %v856
        %v858 = vpop.xlane.xlu0 %857
        %v859 = vsel %vm480, %v855, 0.0
        %860 = vadd.xlane.f32.xlu0 %v859
        %v861 = vpop.xlane.xlu0 %860
        %v862 = vrcp.pop %v858
        %v863 = vmul.f32 %v858, %v862
        %v864 = vsub.f32 1.0, %v863
        %v865 = vmul.f32 %v862, %v864
        %v866 = vadd.f32 %v862, %v865
        %vm867 = vweird.f32 %v858
        %vm868 = vweird.f32 %v862
        %vm869 = vmor %vm867, %vm868
        %v870 = vsel %vm869, %v862, %v866
        %v871 = vand.u32 2147483647, %v858
        %vm872 = vcmp.eq.f32.partialorder %v871, 8.507059e+37
        %v873 = vand.u32 %v858, 2147483648
        %v874 = vor.u32 1.1754944e-38, %v873
        %v875 = vsel %vm872, %v874, %v870
        %v876 = vmul.f32 %v853, %v875
        %v877 = vrcp.pop %v861
        %v878 = vmul.f32 %v861, %v877
        %v879 = vsub.f32 1.0, %v878
        %v880 = vmul.f32 %v877, %v879
        %v881 = vadd.f32 %v877, %v880
        %vm882 = vweird.f32 %v861
        %vm883 = vweird.f32 %v877
        %vm884 = vmor %vm882, %vm883
        %v885 = vsel %vm884, %v877, %v881
        %v886 = vand.u32 2147483647, %v861
        %vm887 = vcmp.eq.f32.partialorder %v886, 8.507059e+37
        %v888 = vand.u32 %v861, 2147483648
        %v889 = vor.u32 1.1754944e-38, %v888
        %v890 = vsel %vm887, %v889, %v885
        %v891 = vmul.f32 %v855, %v890
        %892 = vrot.lane.b32.xlu0 %v473, 48
        %v893 = vpop.permute.xlu0 %892
        %v896 = vsel %vm480, %v876, 0
        %898 = vmatpush.msra.mxu0 0.0
        %899 = vmatpush.msra.mxu0 0.0
        %900 = vmatpush.msra.mxu0 0.0
        %901 = vmatpush.msra.mxu0 0.0
        %902 = vmatpush.msra.mxu0 0.0
        %903 = vmatpush.msra.mxu0 0.0
        %904 = vmatpush.msra.mxu0 0.0
        %905 = vmatpush.msra.mxu0 0.0
        %906 = vmatpush.msra.mxu0 0.0
        %907 = vmatpush.msra.mxu0 0.0
        %908 = vmatpush.msra.mxu0 0.0
        %909 = vmatpush.msra.mxu0 0.0
        %910 = vmatpush.msra.mxu0 0.0
        %911 = vmatpush.msra.mxu0 0.0
        %912 = vmatpush.msra.mxu0 0.0
        %913 = vmatpush.msra.mxu0 %v893
        %914 = vmatmul.f32.gmra.mxu0 %v896
        %v915 = vpop.f32.mrf.mxu0
        %v916 = vadd.f32 0.0, %v915
        %917 = vdwg.mxu0
        %918 = vrot.lane.b32.xlu0 %v475, 48
        %v919 = vpop.permute.xlu0 %918
        %v922 = vsel %vm480, %v891, 0
        %924 = vmatpush.msra.mxu0 0.0
        %925 = vmatpush.msra.mxu0 0.0
        %926 = vmatpush.msra.mxu0 0.0
        %927 = vmatpush.msra.mxu0 0.0
        %928 = vmatpush.msra.mxu0 0.0
        %929 = vmatpush.msra.mxu0 0.0
        %930 = vmatpush.msra.mxu0 0.0
        %931 = vmatpush.msra.mxu0 0.0
        %932 = vmatpush.msra.mxu0 0.0
        %933 = vmatpush.msra.mxu0 0.0
        %934 = vmatpush.msra.mxu0 0.0
        %935 = vmatpush.msra.mxu0 0.0
        %936 = vmatpush.msra.mxu0 0.0
        %937 = vmatpush.msra.mxu0 0.0
        %938 = vmatpush.msra.mxu0 0.0
        %939 = vmatpush.msra.mxu0 %v919
        %940 = vmatmul.f32.gmra.mxu0 %v922
        %v941 = vpop.f32.mrf.mxu0
        %v942 = vadd.f32 0.0, %v941
        %943 = vdwg.mxu0
        %944 = vrot.lane.b32.xlu0 %v473, 104
        %v945 = vpop.permute.xlu0 %944
        %946 = vrot.lane.b32.xlu0 %v473, 72
        %v947 = vpop.permute.xlu0 %946
        %v948 = vsel %vm480, %v945, 0
        %v950 = vsel %vm480, %v947, 0
        %952 = vmatpush.xpose.msra.mxu0 0.0
        %953 = vmatpush.xpose.msra.mxu0 0.0
        %954 = vmatpush.xpose.msra.mxu0 0.0
        %955 = vmatpush.xpose.msra.mxu0 0.0
        %956 = vmatpush.xpose.msra.mxu0 0.0
        %957 = vmatpush.xpose.msra.mxu0 0.0
        %958 = vmatpush.xpose.msra.mxu0 0.0
        %959 = vmatpush.xpose.msra.mxu0 0.0
        %960 = vmatpush.xpose.msra.mxu0 0.0
        %961 = vmatpush.xpose.msra.mxu0 0.0
        %962 = vmatpush.xpose.msra.mxu0 0.0
        %963 = vmatpush.xpose.msra.mxu0 0.0
        %964 = vmatpush.xpose.msra.mxu0 0.0
        %965 = vmatpush.xpose.msra.mxu0 0.0
        %966 = vmatpush.xpose.msra.mxu0 0.0
        %967 = vmatpush.xpose.msra.mxu0 %v950
        %968 = vmatmul.f32.gmra.mxu0 %v948
        %v969 = vpop.f32.mrf.mxu0
        %v970 = vadd.f32 %v436, %v969
        %971 = vdwg.mxu0
        %972 = vrot.lane.b32.xlu0 %v475, 104
        %v973 = vpop.permute.xlu0 %972
        %974 = vrot.lane.b32.xlu0 %v475, 72
        %v975 = vpop.permute.xlu0 %974
        %v976 = vsel %vm480, %v973, 0
        %v978 = vsel %vm480, %v975, 0
        %980 = vmatpush.xpose.msra.mxu0 0.0
        %981 = vmatpush.xpose.msra.mxu0 0.0
        %982 = vmatpush.xpose.msra.mxu0 0.0
        %983 = vmatpush.xpose.msra.mxu0 0.0
        %984 = vmatpush.xpose.msra.mxu0 0.0
        %985 = vmatpush.xpose.msra.mxu0 0.0
        %986 = vmatpush.xpose.msra.mxu0 0.0
        %987 = vmatpush.xpose.msra.mxu0 0.0
        %988 = vmatpush.xpose.msra.mxu0 0.0
        %989 = vmatpush.xpose.msra.mxu0 0.0
        %990 = vmatpush.xpose.msra.mxu0 0.0
        %991 = vmatpush.xpose.msra.mxu0 0.0
        %992 = vmatpush.xpose.msra.mxu0 0.0
        %993 = vmatpush.xpose.msra.mxu0 0.0
        %994 = vmatpush.xpose.msra.mxu0 0.0
        %995 = vmatpush.xpose.msra.mxu0 %v978
        %996 = vmatmul.f32.gmra.mxu0 %v976
        %v997 = vpop.f32.mrf.mxu0
        %v998 = vadd.f32 %v436, %v997
        %999 = vdwg.mxu0
        %v1000 = vsel %vm480, %v970, -inf
        %1001 = vmax.xlane.f32.xlu0 %v1000
        %v1002 = vpop.xlane.xlu0 %1001
        %v1003 = vsel %vm480, %v998, -inf
        %1004 = vmax.xlane.f32.xlu0 %v1003
        %v1005 = vpop.xlane.xlu0 %1004
        %v1006 = vsub.f32 %v970, %v1002
        %v1007 = vsub.f32 %v998, %v1005
        %v1008 = vmul.f32 %v1006, 1.442695
        %v1009 = vpow.pop %v1008
        %v1010 = vmul.f32 %v1007, 1.442695
        %v1011 = vpow.pop %v1010
        %v1012 = vsel %vm480, %v1009, 0.0
        %1013 = vadd.xlane.f32.xlu0 %v1012
        %v1014 = vpop.xlane.xlu0 %1013
        %v1015 = vsel %vm480, %v1011, 0.0
        %1016 = vadd.xlane.f32.xlu0 %v1015
        %v1017 = vpop.xlane.xlu0 %1016
        %v1018 = vrcp.pop %v1014
        %v1019 = vmul.f32 %v1014, %v1018
        %v1020 = vsub.f32 1.0, %v1019
        %v1021 = vmul.f32 %v1018, %v1020
        %v1022 = vadd.f32 %v1018, %v1021
        %vm1023 = vweird.f32 %v1014
        %vm1024 = vweird.f32 %v1018
        %vm1025 = vmor %vm1023, %vm1024
        %v1026 = vsel %vm1025, %v1018, %v1022
        %v1027 = vand.u32 2147483647, %v1014
        %vm1028 = vcmp.eq.f32.partialorder %v1027, 8.507059e+37
        %v1029 = vand.u32 %v1014, 2147483648
        %v1030 = vor.u32 1.1754944e-38, %v1029
        %v1031 = vsel %vm1028, %v1030, %v1026
        %v1032 = vmul.f32 %v1009, %v1031
        %v1033 = vrcp.pop %v1017
        %v1034 = vmul.f32 %v1017, %v1033
        %v1035 = vsub.f32 1.0, %v1034
        %v1036 = vmul.f32 %v1033, %v1035
        %v1037 = vadd.f32 %v1033, %v1036
        %vm1038 = vweird.f32 %v1017
        %vm1039 = vweird.f32 %v1033
        %vm1040 = vmor %vm1038, %vm1039
        %v1041 = vsel %vm1040, %v1033, %v1037
        %v1042 = vand.u32 2147483647, %v1017
        %vm1043 = vcmp.eq.f32.partialorder %v1042, 8.507059e+37
        %v1044 = vand.u32 %v1017, 2147483648
        %v1045 = vor.u32 1.1754944e-38, %v1044
        %v1046 = vsel %vm1043, %v1045, %v1041
        %v1047 = vmul.f32 %v1011, %v1046
        %1048 = vrot.lane.b32.xlu0 %v473, 40
        %v1049 = vpop.permute.xlu0 %1048
        %v1052 = vsel %vm480, %v1032, 0
        %1054 = vmatpush.msra.mxu0 0.0
        %1055 = vmatpush.msra.mxu0 0.0
        %1056 = vmatpush.msra.mxu0 0.0
        %1057 = vmatpush.msra.mxu0 0.0
        %1058 = vmatpush.msra.mxu0 0.0
        %1059 = vmatpush.msra.mxu0 0.0
        %1060 = vmatpush.msra.mxu0 0.0
        %1061 = vmatpush.msra.mxu0 0.0
        %1062 = vmatpush.msra.mxu0 0.0
        %1063 = vmatpush.msra.mxu0 0.0
        %1064 = vmatpush.msra.mxu0 0.0
        %1065 = vmatpush.msra.mxu0 0.0
        %1066 = vmatpush.msra.mxu0 0.0
        %1067 = vmatpush.msra.mxu0 0.0
        %1068 = vmatpush.msra.mxu0 0.0
        %1069 = vmatpush.msra.mxu0 %v1049
        %1070 = vmatmul.f32.gmra.mxu0 %v1052
        %v1071 = vpop.f32.mrf.mxu0
        %v1072 = vadd.f32 0.0, %v1071
        %1073 = vdwg.mxu0
        %1074 = vrot.lane.b32.xlu0 %v475, 40
        %v1075 = vpop.permute.xlu0 %1074
        %v1078 = vsel %vm480, %v1047, 0
        %1080 = vmatpush.msra.mxu0 0.0
        %1081 = vmatpush.msra.mxu0 0.0
        %1082 = vmatpush.msra.mxu0 0.0
        %1083 = vmatpush.msra.mxu0 0.0
        %1084 = vmatpush.msra.mxu0 0.0
        %1085 = vmatpush.msra.mxu0 0.0
        %1086 = vmatpush.msra.mxu0 0.0
        %1087 = vmatpush.msra.mxu0 0.0
        %1088 = vmatpush.msra.mxu0 0.0
        %1089 = vmatpush.msra.mxu0 0.0
        %1090 = vmatpush.msra.mxu0 0.0
        %1091 = vmatpush.msra.mxu0 0.0
        %1092 = vmatpush.msra.mxu0 0.0
        %1093 = vmatpush.msra.mxu0 0.0
        %1094 = vmatpush.msra.mxu0 0.0
        %1095 = vmatpush.msra.mxu0 %v1075
        %1096 = vmatmul.f32.gmra.mxu0 %v1078
        %v1097 = vpop.f32.mrf.mxu0
        %v1098 = vadd.f32 0.0, %v1097
        %1099 = vdwg.mxu0
        %1102 = vrot.lane.b32.xlu0 %v760, 8
        %v1103 = vpop.permute.xlu0 %1102
        %1104 = vrot.lane.b32.xlu0 %v786, 8
        %v1105 = vpop.permute.xlu0 %1104
        %1110 = vrot.lane.b32.xlu0 %v916, 16
        %v1111 = vpop.permute.xlu0 %1110
        %1112 = vrot.lane.b32.xlu0 %v942, 16
        %v1113 = vpop.permute.xlu0 %1112
        %1118 = vrot.lane.b32.xlu0 %v1072, 24
        %v1119 = vpop.permute.xlu0 %1118
        %1120 = vrot.lane.b32.xlu0 %v1098, 24
        %v1121 = vpop.permute.xlu0 %1120
        %v1124 = vsel %vm480, %v604, %v1103
        %v1125 = vsel %vm480, %v630, %v1105
        %vm1126 = vcmask 130048
        %v1127 = vsel %vm1126, %v1124, %v1111
        %v1128 = vsel %vm1126, %v1125, %v1113
        %vm1129 = vcmask 195584
        %v1130 = vsel %vm1129, %v1127, %v1119
        %v1131 = vsel %vm1129, %v1128, %v1121
        %v1132 = vpack.c.bf16 %v1131, %v1130
        %v1133 = vld [vmem:[%s406] sm:$0xf]
        %v1134 = vld [vmem:[%s406 + $0x4] sm:$0xf]
        %v1135 = vld [vmem:[%s406 + $0x8] sm:$0xf]
        %v1136 = vld [vmem:[%s406 + $0xc] sm:$0xf]
        %v1137 = vperm.slane %v437, 0
        %v1142 = vunpack.c.l.b16 %v1133
        %v1143 = vunpack.c.l.b16 %v1134
        %v1144 = vunpack.c.l.b16 %v1135
        %v1145 = vunpack.c.l.b16 %v1136
        %v1146 = vpack.c.b16 %v1143, %v1142
        %v1147 = vpack.c.b16 %v1145, %v1144
        %v1151 = vsel %vm459, %v1132, 0
        %1153 = vmatpush.bf16.msra.mxu0 0
        %1154 = vmatpush.bf16.msra.mxu0 0
        %1155 = vmatpush.bf16.msra.mxu0 0
        %1156 = vmatpush.bf16.msra.mxu0 0
        %1157 = vmatpush.bf16.msra.mxu0 0
        %1158 = vmatpush.bf16.msra.mxu0 0
        %1159 = vmatpush.bf16.msra.mxu0 %v1147
        %1160 = vmatpush.bf16.msra.mxu0 %v1146
        %1161 = vmatmul.bf16.gmra.mxu0 %v1151
        %v1162 = vpop.f32.mrf.mxu0
        %v1163 = vadd.f32 %v1137, %v1162
        %v1164 = vpop.f32.mrf.mxu0
        %v1165 = vadd.f32 %v1137, %v1164
        %1166 = vdwg.mxu0
        %v1167 = vadd.f32 %v434, %v1163
        %v1168 = vadd.f32 %v435, %v1165
        %v1169 = vsel %vm459, %v1167, 0.0
        %1170 = vadd.xlane.f32.xlu0 %v1169
        %v1171 = vpop.xlane.xlu0 %1170
        %v1172 = vsel %vm459, %v1168, 0.0
        %1173 = vadd.xlane.f32.xlu0 %v1172
        %v1174 = vpop.xlane.xlu0 %1173
        %v1175 = vrcp.pop 32.0
        %v1176 = vmul.f32 32.0, %v1175
        %v1177 = vsub.f32 1.0, %v1176
        %v1178 = vmul.f32 %v1175, %v1177
        %v1179 = vadd.f32 %v1175, %v1178
        %vm1180 = vweird.f32 %v1175
        %v1181 = vsel %vm1180, %v1175, %v1179
        %v1182 = vmul.f32 %v1171, %v1181
        %v1183 = vmul.f32 %v1174, %v1181
        %v1184 = vsub.f32 %v1167, %v1182
        %v1185 = vsub.f32 %v1168, %v1183
        %v1186 = vmul.f32 %v1184, %v1184
        %v1187 = vmul.f32 %v1185, %v1185
        %v1188 = vsel %vm459, %v1186, 0.0
        %1189 = vadd.xlane.f32.xlu0 %v1188
        %v1190 = vpop.xlane.xlu0 %1189
        %v1191 = vsel %vm459, %v1187, 0.0
        %1192 = vadd.xlane.f32.xlu0 %v1191
        %v1193 = vpop.xlane.xlu0 %1192
        %v1194 = vmul.f32 %v1190, %v1181
        %v1195 = vmul.f32 %v1193, %v1181
        %v1196 = vadd.f32 %v1194, 1e-05
        %v1197 = vadd.f32 %v1195, 1e-05
        %v1198 = vrsqrt.pop %v1196
        %v1199 = vmul.f32 %v1198, %v1196
        %v1200 = vmul.f32 %v1199, %v1198
        %v1201 = vmul.f32 0.5, %v1200
        %v1202 = vsub.f32 1.5, %v1201
        %v1203 = vmul.f32 %v1198, %v1202
        %vm1204 = vweird.f32 %v1196
        %vm1205 = vweird.f32 %v1198
        %vm1206 = vmor %vm1204, %vm1205
        %v1207 = vsel %vm1206, %v1198, %v1203
        %v1208 = vrsqrt.pop %v1197
        %v1209 = vmul.f32 %v1208, %v1197
        %v1210 = vmul.f32 %v1209, %v1208
        %v1211 = vmul.f32 0.5, %v1210
        %v1212 = vsub.f32 1.5, %v1211
        %v1213 = vmul.f32 %v1208, %v1212
        %vm1214 = vweird.f32 %v1197
        %vm1215 = vweird.f32 %v1208
        %vm1216 = vmor %vm1214, %vm1215
        %v1217 = vsel %vm1216, %v1208, %v1213
        %v1218 = vmul.f32 %v1184, %v1207
        %v1219 = vmul.f32 %v1185, %v1217
        %v1220 = vperm.slane %v437, 1
        %v1221 = vmul.f32 %v1218, %v1220
        %v1222 = vmul.f32 %v1219, %v1220
        %v1223 = vperm.slane %v437, 2
        %v1224 = vadd.f32 %v1221, %v1223
        %v1225 = vadd.f32 %v1222, %v1223
        %v1226 = vpack.c.bf16 %v1225, %v1224
        %v1227 = vld [vmem:[%s411] sm:$0xf]
        %v1228 = vld [vmem:[%s411 + $0x4] sm:$0xf]
        %v1229 = vld [vmem:[%s411 + $0x8] sm:$0xf]
        %v1230 = vld [vmem:[%s411 + $0xc] sm:$0xf]
        %v1231 = vld [vmem:[%s414] sm:$0x1]
        %v1233 = vperm.slane %v1231, 0
        %v1239 = vunpack.c.l.b16 %v1227
        %v1240 = vunpack.c.l.b16 %v1228
        %v1241 = vunpack.c.l.b16 %v1229
        %v1242 = vunpack.c.l.b16 %v1230
        %v1243 = vpack.c.b16 %v1240, %v1239
        %v1244 = vpack.c.b16 %v1242, %v1241
        %v1248 = vsel %vm459, %v1226, 0
        %1250 = vmatpush.bf16.msra.mxu0 0
        %1251 = vmatpush.bf16.msra.mxu0 0
        %1252 = vmatpush.bf16.msra.mxu0 0
        %1253 = vmatpush.bf16.msra.mxu0 0
        %1254 = vmatpush.bf16.msra.mxu0 0
        %1255 = vmatpush.bf16.msra.mxu0 0
        %1256 = vmatpush.bf16.msra.mxu0 %v1244
        %1257 = vmatpush.bf16.msra.mxu0 %v1243
        %1258 = vmatmul.bf16.gmra.mxu0 %v1248
        %v1259 = vpop.f32.mrf.mxu0
        %v1260 = vadd.f32 %v1233, %v1259
        %v1261 = vpop.f32.mrf.mxu0
        %v1262 = vadd.f32 %v1233, %v1261
        %1263 = vdwg.mxu0
        %v1264 = vmul.f32 %v1260, 0.5
        %v1265 = vmul.f32 %v1262, 0.5
        %v1266 = vmul.f32 %v1260, 0.044715
        %v1267 = vmul.f32 %v1262, 0.044715
        %v1268 = vmul.f32 %v1266, %v1260
        %v1269 = vmul.f32 %v1267, %v1262
        %v1270 = vmul.f32 %v1268, %v1260
        %v1271 = vmul.f32 %v1269, %v1262
        %v1272 = vadd.f32 %v1260, %v1270
        %v1273 = vadd.f32 %v1262, %v1271
        %v1274 = vmul.f32 %v1272, 0.7978846
        %v1275 = vmul.f32 %v1273, 0.7978846
        %v1276 = vtanh.pop %v1274
        %v1277 = vtanh.pop %v1275
        %v1278 = vadd.f32 %v1276, 1.0
        %v1279 = vadd.f32 %v1277, 1.0
        %v1280 = vmul.f32 %v1264, %v1278
        %v1281 = vmul.f32 %v1265, %v1279
        %v1282 = vpack.c.bf16 %v1281, %v1280
        %v1283 = vld [vmem:[%s419] sm:$0xf]
        %v1284 = vld [vmem:[%s419 + $0x4] sm:$0xf]
        %v1285 = vld [vmem:[%s419 + $0x8] sm:$0xf]
        %v1286 = vld [vmem:[%s419 + $0xc] sm:$0xf]
        %v1287 = vld [vmem:[%s419 + $0x10] sm:$0xf]
        %v1288 = vld [vmem:[%s419 + $0x14] sm:$0xf]
        %v1289 = vld [vmem:[%s419 + $0x18] sm:$0xf]
        %v1290 = vld [vmem:[%s419 + $0x1c] sm:$0xf]
        %v1291 = vperm.slane %v437, 3
        %v1300 = vunpack.c.l.b16 %v1283
        %v1301 = vunpack.c.l.b16 %v1284
        %v1302 = vunpack.c.l.b16 %v1285
        %v1303 = vunpack.c.l.b16 %v1286
        %v1304 = vunpack.c.l.b16 %v1287
        %v1305 = vunpack.c.l.b16 %v1288
        %v1306 = vunpack.c.l.b16 %v1289
        %v1307 = vunpack.c.l.b16 %v1290
        %v1308 = vpack.c.b16 %v1301, %v1300
        %v1309 = vpack.c.b16 %v1303, %v1302
        %v1310 = vpack.c.b16 %v1305, %v1304
        %v1311 = vpack.c.b16 %v1307, %v1306
        %vm1316 = vcmask 523264
        %v1318 = vsel %vm1316, %v1282, 0
        %1320 = vmatpush.bf16.msra.mxu0 0
        %1321 = vmatpush.bf16.msra.mxu0 0
        %1322 = vmatpush.bf16.msra.mxu0 0
        %1323 = vmatpush.bf16.msra.mxu0 0
        %1324 = vmatpush.bf16.msra.mxu0 %v1311
        %1325 = vmatpush.bf16.msra.mxu0 %v1310
        %1326 = vmatpush.bf16.msra.mxu0 %v1309
        %1327 = vmatpush.bf16.msra.mxu0 %v1308
        %1328 = vmatmul.bf16.gmra.mxu0 %v1318
        %v1329 = vpop.f32.mrf.mxu0
        %v1330 = vadd.f32 %v1291, %v1329
        %v1331 = vpop.f32.mrf.mxu0
        %v1332 = vadd.f32 %v1291, %v1331
        %1333 = vdwg.mxu0
        %v1334 = vadd.f32 %v1224, %v1330
        %v1335 = vadd.f32 %v1225, %v1332
        %v1336 = vsel %vm459, %v1334, 0.0
        %1337 = vadd.xlane.f32.xlu0 %v1336
        %v1338 = vpop.xlane.xlu0 %1337
        %v1339 = vsel %vm459, %v1335, 0.0
        %1340 = vadd.xlane.f32.xlu0 %v1339
        %v1341 = vpop.xlane.xlu0 %1340
        %v1342 = vmul.f32 %v1338, %v1181
        %v1343 = vmul.f32 %v1341, %v1181
        %v1344 = vsub.f32 %v1334, %v1342
        %v1345 = vsub.f32 %v1335, %v1343
        %v1346 = vmul.f32 %v1344, %v1344
        %v1347 = vmul.f32 %v1345, %v1345
        %v1348 = vsel %vm459, %v1346, 0.0
        %1349 = vadd.xlane.f32.xlu0 %v1348
        %v1350 = vpop.xlane.xlu0 %1349
        %v1351 = vsel %vm459, %v1347, 0.0
        %1352 = vadd.xlane.f32.xlu0 %v1351
        %v1353 = vpop.xlane.xlu0 %1352
        %v1354 = vmul.f32 %v1350, %v1181
        %v1355 = vmul.f32 %v1353, %v1181
        %v1356 = vadd.f32 %v1354, 1e-05
        %v1357 = vadd.f32 %v1355, 1e-05
        %v1358 = vrsqrt.pop %v1356
        %v1359 = vmul.f32 %v1358, %v1356
        %v1360 = vmul.f32 %v1359, %v1358
        %v1361 = vmul.f32 0.5, %v1360
        %v1362 = vsub.f32 1.5, %v1361
        %v1363 = vmul.f32 %v1358, %v1362
        %vm1364 = vweird.f32 %v1356
        %vm1365 = vweird.f32 %v1358
        %vm1366 = vmor %vm1364, %vm1365
        %v1367 = vsel %vm1366, %v1358, %v1363
        %v1368 = vrsqrt.pop %v1357
        %v1369 = vmul.f32 %v1368, %v1357
        %v1370 = vmul.f32 %v1369, %v1368
        %v1371 = vmul.f32 0.5, %v1370
        %v1372 = vsub.f32 1.5, %v1371
        %v1373 = vmul.f32 %v1368, %v1372
        %vm1374 = vweird.f32 %v1357
        %vm1375 = vweird.f32 %v1368
        %vm1376 = vmor %vm1374, %vm1375
        %v1377 = vsel %vm1376, %v1368, %v1373
        %v1378 = vmul.f32 %v1344, %v1367
        %v1379 = vmul.f32 %v1345, %v1377
        %v1380 = vperm.slane %v437, 4
        %v1381 = vmul.f32 %v1378, %v1380
        %v1382 = vmul.f32 %v1379, %v1380
        %v1383 = vperm.slane %v437, 5
        %v1384 = vadd.f32 %v1381, %v1383
        %v1385 = vadd.f32 %v1382, %v1383
        %1386 = vst.msk [vmem:[#allocation2] sm:$0xff] %vm459, %v1384
        %1387 = vst.msk [vmem:[#allocation2 + $0x8] sm:$0xff] %vm459, %v1385
        // Predicated region
        $region61: #{ernie_rna_onestage.1} parent=55 // pred_check
          %p1388 = pneg %p258
        $region62: #{ernie_rna_onestage.1} parent=55 // pred_check_branch
          %1390 = sbr.rel (%p1388) target = $region64
        $region63: #{ernie_rna_onestage.1} parent=55 // pred_region
          %1392 = vsyncadd [#allocation3], 0
          %s1393 = sshll.u32 [#allocation2], 4
          %s1394 = int_to_ptr.vmem [resolvable:$true] %s1393
          %s1395 = sshll.u32 %s9, 4
          %s1396 = int_to_ptr.hbm [resolvable:$true] %s1395
          %1401 = dma.vmem_to_hbm [thread:$0]  %s1394, 256, %s1396, [#allocation3], 128, 128, 8
        $region64: #{ernie_rna_onestage.1} parent=55 // pred_fallthru
          _
        // Predicated region
        $region65: #{ernie_rna_onestage.1} parent=55 // pred_check
          %p1402 = pneg %p258
        $region66: #{ernie_rna_onestage.1} parent=55 // pred_check_branch
          %1404 = sbr.rel (%p1402) target = $region68
        $region67: #{ernie_rna_onestage.1} parent=55 // pred_region
          %1406 = dma.done [#allocation3], 256
        $region68: #{ernie_rna_onestage.1} parent=55 // pred_fallthru
          _
      $region56: #{ernie_rna_onestage.1} parent=5 // pred_fallthru
        _
      %p1407 = scmp.le.s32.totalorder 2, %s16
      // Predicated region
      $region69: #{ernie_rna_onestage.1} parent=5 // pred_check
        %p1408 = pneg %p1407
      $region70: #{ernie_rna_onestage.1} parent=5 // pred_check_branch
        %1410 = sbr.rel (%p1408) target = $region72
      $region71: #{ernie_rna_onestage.1} parent=5 // pred_region
        %s1411 = ssub.s32 %s16, 2
      $region72: #{ernie_rna_onestage.1} parent=5 // pred_fallthru
        _
    $region6: #{ernie_rna_onestage.1} parent=1 // loop_footer
      %s20 = sadd.s32 1, %s16
    $region7: #{ernie_rna_onestage.1} parent=1 // loop_footer_branch
      %15 = sbr.rel target = $region3
    $region8: #{ernie_rna_onestage.1} parent=1 // loop_exit
      _
    %1412 = vsyncpa [#allocation3], 1
    %s1413 = scalar_lea.sflag [#allocation3], 1
    %1414 = vsyncpa %s1413, 1

</llo_original>
